<compile_context>
chip_gen: v5e
topology: v5e:2x2
jax: 0.10.0
libtpu: 0.0.40
codegen_flags: <defaults>
</compile_context>

<pallas_src>
import numpy as np
import jax
import jax.numpy as jnp
from jax.experimental import pallas as pl
from jax.experimental.pallas import tpu as pltpu

# ----------------------------- configuration --------------------------------
DATA_LABEL = "generic"                       # not lorenz/henon -> input size 1
ANSATZ = "lstm_2"
NUM_LAYERS = int(ANSATZ.split("_")[-1])      # = 2, same rule as the module
HIDDEN = 32
INPUT_SIZE = 1                               # TODO(synk): lorenz/henon (in=3/2) would need a real layer-0 matmul
OUT_DIM = 1
SEQ_LENGTH = 8
BATCH = 8


# ------------------------------- Pallas kernel -------------------------------
def lstm_kernel(x_ref, wih0_ref, wih_ref, whh_ref, bias_ref, wfc_ref, bfc_ref,
                out_ref):
    B, T, H, L = BATCH, SEQ_LENGTH, HIDDEN, NUM_LAYERS

    x_all = x_ref[...]                       # (B, T)        f32
    wih0 = wih0_ref[...]                     # (1, 4H)       f32 (layer-0, in=1)
    wih_rest = wih_ref[...]                  # (L-1, H, 4H)  bf16
    whh_all = whh_ref[...]                   # (L, H, 4H)    bf16
    bias_all = bias_ref[...]                 # (L, 1, 4H)    f32 (b_ih + b_hh)

    # ---- layer-0 input projections: one vectorized VPU pass over all t ------
    # input_size == 1 -> broadcast multiply, no matmul.  Shape (T, B, 4H) so
    # gx0[t] is a contiguous (B, 4H) slab per step.
    gx0 = x_all.T[:, :, None] * wih0 + bias_all[0]

    def cell(gates, c):
        # PyTorch gate order i, f, g, o.
        i_g = jax.nn.sigmoid(gates[:, 0 * H:1 * H])
        f_g = jax.nn.sigmoid(gates[:, 1 * H:2 * H])
        g_g = jnp.tanh(gates[:, 2 * H:3 * H])
        o_g = jax.nn.sigmoid(gates[:, 3 * H:4 * H])
        c_new = f_g * c + i_g * g_g
        return o_g * jnp.tanh(c_new), c_new

    def bdot(a_f32, w_bf16):
        # single bf16 MXU pass, f32 accumulation
        return jnp.dot(a_f32.astype(jnp.bfloat16), w_bf16,
                       preferred_element_type=jnp.float32)

    zeros = jnp.zeros((B, H), jnp.float32)
    h = [zeros] * L
    c = [zeros] * L

    # ---- wavefront schedule: step s runs layer l at time t = s - l ----------
    # Cells within one step are data-independent (layer l at t consumes
    # h^{l-1}_t, produced on the PREVIOUS wavefront step), so they overlap.
    for s in range(T + L - 1):
        h_prev = list(h)                     # snapshot: h^l after step s-1
        for l in range(L):
            t = s - l
            if 0 <= t < T:
                if l == 0:
                    acc = gx0[t]
                else:
                    # inter-layer input projection (off the recurrent chain)
                    acc = bdot(h_prev[l - 1], wih_rest[l - 1]) + bias_all[l]
                # recurrent contribution: accumulate the MXU result into acc
                acc = acc + bdot(h[l], whh_all[l])
                h[l], c[l] = cell(acc, c[l])

    # ---- fused readout fc(out[:, -1, :]): VPU multiply + lane reduction -----
    # (avoids an N=1 MXU pass); scalar bias read from SMEM.
    out_ref[...] = (jnp.sum(h[L - 1] * wfc_ref[...], axis=-1, keepdims=True)
                    + bfc_ref[0, 0])


def lstm_forward(x, wih0T, wihT_rest, whhT, biasT, wfc_row, bfc):
    """x: (B, seq_length, 1) float32 — same input as the PyTorch module."""
    B = x.shape[0]
    x2d = jnp.squeeze(x, axis=-1)            # (B, T), input size 1
    return pl.pallas_call(
        lstm_kernel,
        out_shape=jax.ShapeDtypeStruct((B, OUT_DIM), jnp.float32),
        # No grid: single invocation, everything resident in VMEM/SMEM.
        in_specs=[
            pl.BlockSpec(memory_space=pltpu.MemorySpace.VMEM),   # x        (B, T)
            pl.BlockSpec(memory_space=pltpu.MemorySpace.VMEM),   # wih0     (1, 4H)    f32
            pl.BlockSpec(memory_space=pltpu.MemorySpace.VMEM),   # wih_rest (L-1,H,4H) bf16
            pl.BlockSpec(memory_space=pltpu.MemorySpace.VMEM),   # whh      (L, H, 4H) bf16
            pl.BlockSpec(memory_space=pltpu.MemorySpace.VMEM),   # bias     (L, 1, 4H) f32
            pl.BlockSpec(memory_space=pltpu.MemorySpace.VMEM),   # wfc      (1, H)     f32
            pl.BlockSpec(memory_space=pltpu.MemorySpace.SMEM),   # fc bias  (1, 1) scalar
        ],
        out_specs=pl.BlockSpec(memory_space=pltpu.MemorySpace.VMEM),
    )(x2d, wih0T, wihT_rest, whhT, biasT, wfc_row, bfc)


# ------------------------------ pure-numpy reference -------------------------
def reference_lstm(x2d, Wih, Whh, bih, bhh, Wfc, bfc, H, L):
    """Standard stacked LSTM (PyTorch gate order i,f,g,o), batch_first."""
    B, T = x2d.shape

    def sig(z):
        return 1.0 / (1.0 + np.exp(-z))

    inp_seq = x2d[:, :, None]                                    # (B, T, 1)
    for l in range(L):
        h = np.zeros((B, H)); c = np.zeros((B, H))
        outs = []
        for t in range(T):
            gates = (inp_seq[:, t, :] @ Wih[l].T + h @ Whh[l].T
                     + bih[l] + bhh[l])
            i = sig(gates[:, 0 * H:1 * H])
            f = sig(gates[:, 1 * H:2 * H])
            g = np.tanh(gates[:, 2 * H:3 * H])
            o = sig(gates[:, 3 * H:4 * H])
            c = f * c + i * g
            h = o * np.tanh(c)
            outs.append(h)
        inp_seq = np.stack(outs, axis=1)                         # (B, T, H)
    return inp_seq[:, -1, :] @ Wfc.T + bfc


# ----------------------------------- main ------------------------------------
if __name__ == "__main__":
    B, T, H, L = BATCH, SEQ_LENGTH, HIDDEN, NUM_LAYERS
    key = jax.random.PRNGKey(0)
    keys = jax.random.split(key, 16)

    # module input: (B, seq_length, 1)
    x = jax.random.uniform(keys[0], (B, T, INPUT_SIZE),
                           minval=-1.0, maxval=1.0, dtype=jnp.float32)

    # deterministic LSTM / Linear params (PyTorch-style uniform +-1/sqrt(H))
    bound = 1.0 / np.sqrt(H)

    def u(k, shape):
        return np.asarray(jax.random.uniform(k, shape, minval=-bound,
                                             maxval=bound), dtype=np.float64)

    Wih, Whh, bih, bhh = [], [], [], []
    ki = 1
    for l in range(L):
        in_l = INPUT_SIZE if l == 0 else H
        Wih.append(u(keys[ki], (4 * H, in_l))); ki += 1
        Whh.append(u(keys[ki], (4 * H, H))); ki += 1
        bih.append(u(keys[ki], (4 * H,))); ki += 1
        bhh.append(u(keys[ki], (4 * H,))); ki += 1
    Wfc = u(keys[ki], (OUT_DIM, H)); ki += 1
    bfc = u(keys[ki], (OUT_DIM,)); ki += 1

    # ---- host-side packing / algebraic fusion -------------------------------
    # matmul weights in bf16 (single MXU pass), elementwise weights in f32.
    wih0T = jnp.asarray(Wih[0].T.astype(np.float32))                      # (1, 4H)  f32
    wihT_rest = jnp.asarray(np.stack([Wih[l].T for l in range(1, L)])
                            .astype(np.float32)).astype(jnp.bfloat16)     # (L-1,H,4H) bf16
    whhT = jnp.asarray(np.stack([Whh[l].T for l in range(L)])
                       .astype(np.float32)).astype(jnp.bfloat16)          # (L,H,4H) bf16
    biasT = jnp.asarray(np.stack([(bih[l] + bhh[l]).reshape(1, 4 * H)
                                  for l in range(L)]).astype(np.float32)) # (L,1,4H) f32
    wfc_row = jnp.asarray(Wfc.astype(np.float32))                         # (1, H)   f32
    bfc_smem = jnp.asarray(bfc.reshape(1, 1).astype(np.float32))          # (1, 1)   SMEM

    out = lstm_forward(x, wih0T, wihT_rest, whhT, biasT, wfc_row, bfc_smem)
    out = jax.block_until_ready(out)

    ref = reference_lstm(np.asarray(jnp.squeeze(x, -1), dtype=np.float64),
                         Wih, Whh, bih, bhh, Wfc, bfc, H, L)

    assert out.shape == (B, OUT_DIM)
    # Tolerance covers bf16 MXU operands over the 2-layer x 8-step recurrence
    # (worst-case operand-rounding accumulation is a few e-3).
    assert np.allclose(np.asarray(out), ref, atol=1e-2, rtol=1e-2), (out, ref)
    print("KERNEL_OK")
</pallas_src>

<mosaic_0001>
module attributes {stable_mosaic.version = 11 : i64} {
  func.func @lstm_kernel(%arg0: memref<8x8xf32, #tpu.memory_space<vmem>>, %arg1: memref<1x128xf32, #tpu.memory_space<vmem>>, %arg2: memref<1x32x128xbf16, #tpu.memory_space<vmem>>, %arg3: memref<2x32x128xbf16, #tpu.memory_space<vmem>>, %arg4: memref<2x1x128xf32, #tpu.memory_space<vmem>>, %arg5: memref<1x32xf32, #tpu.memory_space<vmem>>, %arg6: memref<1x1xf32, #tpu.memory_space<smem>>, %arg7: memref<8x1xf32, #tpu.memory_space<vmem>>) attributes {dimension_semantics = [], scalar_prefetch = 0 : i64, scratch_operands = 0 : i64, tpu.core_type = #tpu.core_type<tc>} {
    %c0 = arith.constant 0 : index
    %c0_0 = arith.constant 0 : index
    %0 = vector.load %arg0[%c0, %c0_0] : memref<8x8xf32, #tpu.memory_space<vmem>>, vector<8x8xf32>
    %c0_1 = arith.constant 0 : index
    %c0_2 = arith.constant 0 : index
    %1 = vector.load %arg1[%c0_1, %c0_2] : memref<1x128xf32, #tpu.memory_space<vmem>>, vector<1x128xf32>
    %c0_3 = arith.constant 0 : index
    %c0_4 = arith.constant 0 : index
    %c0_5 = arith.constant 0 : index
    %2 = vector.load %arg2[%c0_3, %c0_4, %c0_5] : memref<1x32x128xbf16, #tpu.memory_space<vmem>>, vector<1x32x128xbf16>
    %c0_6 = arith.constant 0 : index
    %c0_7 = arith.constant 0 : index
    %c0_8 = arith.constant 0 : index
    %3 = vector.load %arg3[%c0_6, %c0_7, %c0_8] : memref<2x32x128xbf16, #tpu.memory_space<vmem>>, vector<2x32x128xbf16>
    %c0_9 = arith.constant 0 : index
    %c0_10 = arith.constant 0 : index
    %c0_11 = arith.constant 0 : index
    %4 = vector.load %arg4[%c0_9, %c0_10, %c0_11] : memref<2x1x128xf32, #tpu.memory_space<vmem>>, vector<2x1x128xf32>
    %5 = tpu.transpose %0, [1, 0] : vector<8x8xf32> -> vector<8x8xf32>
    %6 = vector.shape_cast %5 : vector<8x8xf32> to vector<8x8x1xf32>
    %7 = vector.shape_cast %1 : vector<1x128xf32> to vector<1x1x128xf32>
    %8 = vector.broadcast %6 : vector<8x8x1xf32> to vector<8x8x128xf32>
    %9 = vector.broadcast %7 : vector<1x1x128xf32> to vector<8x8x128xf32>
    %10 = arith.mulf %8, %9 : vector<8x8x128xf32>
    %11 = vector.extract_strided_slice %4 {offsets = [0, 0, 0], sizes = [1, 1, 128], strides = [1, 1, 1]} : vector<2x1x128xf32> to vector<1x1x128xf32>
    %12 = vector.shape_cast %11 : vector<1x1x128xf32> to vector<1x128xf32>
    %13 = vector.shape_cast %12 : vector<1x128xf32> to vector<1x1x128xf32>
    %14 = vector.broadcast %13 : vector<1x1x128xf32> to vector<8x8x128xf32>
    %15 = arith.addf %10, %14 : vector<8x8x128xf32>
    %cst = arith.constant 0.000000e+00 : f32
    %16 = vector.broadcast %cst : f32 to vector<8x32xf32>
    %17 = vector.extract_strided_slice %15 {offsets = [0, 0, 0], sizes = [1, 8, 128], strides = [1, 1, 1]} : vector<8x8x128xf32> to vector<1x8x128xf32>
    %18 = vector.shape_cast %17 : vector<1x8x128xf32> to vector<8x128xf32>
    %19 = vector.extract_strided_slice %3 {offsets = [0, 0, 0], sizes = [1, 32, 128], strides = [1, 1, 1]} : vector<2x32x128xbf16> to vector<1x32x128xbf16>
    %20 = vector.shape_cast %19 : vector<1x32x128xbf16> to vector<32x128xbf16>
    %21 = arith.truncf %16 : vector<8x32xf32> to vector<8x32xbf16>
    %cst_12 = arith.constant dense<0.000000e+00> : vector<8x128xf32>
    %22 = tpu.matmul %21, %20, %cst_12 {dimension_numbers = #tpu.dot_dimension_numbers<[1], [0], [0], [1], [0, 0, 1, 1], [], []>} : vector<8x32xbf16>, vector<32x128xbf16>, vector<8x128xf32> -> vector<8x128xf32>
    %23 = arith.addf %18, %22 : vector<8x128xf32>
    %24 = vector.extract_strided_slice %23 {offsets = [0, 0], sizes = [8, 32], strides = [1, 1]} : vector<8x128xf32> to vector<8x32xf32>
    %25 = arith.negf %24 : vector<8x32xf32>
    %26 = math.exp %25 : vector<8x32xf32>
    %cst_13 = arith.constant 1.000000e+00 : f32
    %27 = vector.broadcast %cst_13 : f32 to vector<8x32xf32>
    %28 = arith.addf %27, %26 : vector<8x32xf32>
    %29 = arith.divf %27, %28 : vector<8x32xf32>
    %30 = vector.extract_strided_slice %23 {offsets = [0, 32], sizes = [8, 32], strides = [1, 1]} : vector<8x128xf32> to vector<8x32xf32>
    %31 = arith.negf %30 : vector<8x32xf32>
    %32 = math.exp %31 : vector<8x32xf32>
    %cst_14 = arith.constant 1.000000e+00 : f32
    %33 = vector.broadcast %cst_14 : f32 to vector<8x32xf32>
    %34 = arith.addf %33, %32 : vector<8x32xf32>
    %35 = arith.divf %33, %34 : vector<8x32xf32>
    %36 = vector.extract_strided_slice %23 {offsets = [0, 64], sizes = [8, 32], strides = [1, 1]} : vector<8x128xf32> to vector<8x32xf32>
    %37 = math.tanh %36 : vector<8x32xf32>
    %38 = vector.extract_strided_slice %23 {offsets = [0, 96], sizes = [8, 32], strides = [1, 1]} : vector<8x128xf32> to vector<8x32xf32>
    %39 = arith.negf %38 : vector<8x32xf32>
    %40 = math.exp %39 : vector<8x32xf32>
    %cst_15 = arith.constant 1.000000e+00 : f32
    %41 = vector.broadcast %cst_15 : f32 to vector<8x32xf32>
    %42 = arith.addf %41, %40 : vector<8x32xf32>
    %43 = arith.divf %41, %42 : vector<8x32xf32>
    %44 = arith.mulf %35, %16 : vector<8x32xf32>
    %45 = arith.mulf %29, %37 : vector<8x32xf32>
    %46 = arith.addf %44, %45 : vector<8x32xf32>
    %47 = math.tanh %46 : vector<8x32xf32>
    %48 = arith.mulf %43, %47 : vector<8x32xf32>
    %49 = vector.extract_strided_slice %15 {offsets = [1, 0, 0], sizes = [1, 8, 128], strides = [1, 1, 1]} : vector<8x8x128xf32> to vector<1x8x128xf32>
    %50 = vector.shape_cast %49 : vector<1x8x128xf32> to vector<8x128xf32>
    %51 = vector.extract_strided_slice %3 {offsets = [0, 0, 0], sizes = [1, 32, 128], strides = [1, 1, 1]} : vector<2x32x128xbf16> to vector<1x32x128xbf16>
    %52 = vector.shape_cast %51 : vector<1x32x128xbf16> to vector<32x128xbf16>
    %53 = arith.truncf %48 : vector<8x32xf32> to vector<8x32xbf16>
    %cst_16 = arith.constant dense<0.000000e+00> : vector<8x128xf32>
    %54 = tpu.matmul %53, %52, %cst_16 {dimension_numbers = #tpu.dot_dimension_numbers<[1], [0], [0], [1], [0, 0, 1, 1], [], []>} : vector<8x32xbf16>, vector<32x128xbf16>, vector<8x128xf32> -> vector<8x128xf32>
    %55 = arith.addf %50, %54 : vector<8x128xf32>
    %56 = vector.extract_strided_slice %55 {offsets = [0, 0], sizes = [8, 32], strides = [1, 1]} : vector<8x128xf32> to vector<8x32xf32>
    %57 = arith.negf %56 : vector<8x32xf32>
    %58 = math.exp %57 : vector<8x32xf32>
    %cst_17 = arith.constant 1.000000e+00 : f32
    %59 = vector.broadcast %cst_17 : f32 to vector<8x32xf32>
    %60 = arith.addf %59, %58 : vector<8x32xf32>
    %61 = arith.divf %59, %60 : vector<8x32xf32>
    %62 = vector.extract_strided_slice %55 {offsets = [0, 32], sizes = [8, 32], strides = [1, 1]} : vector<8x128xf32> to vector<8x32xf32>
    %63 = arith.negf %62 : vector<8x32xf32>
    %64 = math.exp %63 : vector<8x32xf32>
    %cst_18 = arith.constant 1.000000e+00 : f32
    %65 = vector.broadcast %cst_18 : f32 to vector<8x32xf32>
    %66 = arith.addf %65, %64 : vector<8x32xf32>
    %67 = arith.divf %65, %66 : vector<8x32xf32>
    %68 = vector.extract_strided_slice %55 {offsets = [0, 64], sizes = [8, 32], strides = [1, 1]} : vector<8x128xf32> to vector<8x32xf32>
    %69 = math.tanh %68 : vector<8x32xf32>
    %70 = vector.extract_strided_slice %55 {offsets = [0, 96], sizes = [8, 32], strides = [1, 1]} : vector<8x128xf32> to vector<8x32xf32>
    %71 = arith.negf %70 : vector<8x32xf32>
    %72 = math.exp %71 : vector<8x32xf32>
    %cst_19 = arith.constant 1.000000e+00 : f32
    %73 = vector.broadcast %cst_19 : f32 to vector<8x32xf32>
    %74 = arith.addf %73, %72 : vector<8x32xf32>
    %75 = arith.divf %73, %74 : vector<8x32xf32>
    %76 = arith.mulf %67, %46 : vector<8x32xf32>
    %77 = arith.mulf %61, %69 : vector<8x32xf32>
    %78 = arith.addf %76, %77 : vector<8x32xf32>
    %79 = math.tanh %78 : vector<8x32xf32>
    %80 = arith.mulf %75, %79 : vector<8x32xf32>
    %81 = vector.shape_cast %2 : vector<1x32x128xbf16> to vector<32x128xbf16>
    %82 = arith.truncf %48 : vector<8x32xf32> to vector<8x32xbf16>
    %cst_20 = arith.constant dense<0.000000e+00> : vector<8x128xf32>
    %83 = tpu.matmul %82, %81, %cst_20 {dimension_numbers = #tpu.dot_dimension_numbers<[1], [0], [0], [1], [0, 0, 1, 1], [], []>} : vector<8x32xbf16>, vector<32x128xbf16>, vector<8x128xf32> -> vector<8x128xf32>
    %84 = vector.extract_strided_slice %4 {offsets = [1, 0, 0], sizes = [1, 1, 128], strides = [1, 1, 1]} : vector<2x1x128xf32> to vector<1x1x128xf32>
    %85 = vector.shape_cast %84 : vector<1x1x128xf32> to vector<1x128xf32>
    %86 = vector.broadcast %85 : vector<1x128xf32> to vector<8x128xf32>
    %87 = arith.addf %83, %86 : vector<8x128xf32>
    %88 = vector.extract_strided_slice %3 {offsets = [1, 0, 0], sizes = [1, 32, 128], strides = [1, 1, 1]} : vector<2x32x128xbf16> to vector<1x32x128xbf16>
    %89 = vector.shape_cast %88 : vector<1x32x128xbf16> to vector<32x128xbf16>
    %90 = arith.truncf %16 : vector<8x32xf32> to vector<8x32xbf16>
    %cst_21 = arith.constant dense<0.000000e+00> : vector<8x128xf32>
    %91 = tpu.matmul %90, %89, %cst_21 {dimension_numbers = #tpu.dot_dimension_numbers<[1], [0], [0], [1], [0, 0, 1, 1], [], []>} : vector<8x32xbf16>, vector<32x128xbf16>, vector<8x128xf32> -> vector<8x128xf32>
    %92 = arith.addf %87, %91 : vector<8x128xf32>
    %93 = vector.extract_strided_slice %92 {offsets = [0, 0], sizes = [8, 32], strides = [1, 1]} : vector<8x128xf32> to vector<8x32xf32>
    %94 = arith.negf %93 : vector<8x32xf32>
    %95 = math.exp %94 : vector<8x32xf32>
    %cst_22 = arith.constant 1.000000e+00 : f32
    %96 = vector.broadcast %cst_22 : f32 to vector<8x32xf32>
    %97 = arith.addf %96, %95 : vector<8x32xf32>
    %98 = arith.divf %96, %97 : vector<8x32xf32>
    %99 = vector.extract_strided_slice %92 {offsets = [0, 32], sizes = [8, 32], strides = [1, 1]} : vector<8x128xf32> to vector<8x32xf32>
    %100 = arith.negf %99 : vector<8x32xf32>
    %101 = math.exp %100 : vector<8x32xf32>
    %cst_23 = arith.constant 1.000000e+00 : f32
    %102 = vector.broadcast %cst_23 : f32 to vector<8x32xf32>
    %103 = arith.addf %102, %101 : vector<8x32xf32>
    %104 = arith.divf %102, %103 : vector<8x32xf32>
    %105 = vector.extract_strided_slice %92 {offsets = [0, 64], sizes = [8, 32], strides = [1, 1]} : vector<8x128xf32> to vector<8x32xf32>
    %106 = math.tanh %105 : vector<8x32xf32>
    %107 = vector.extract_strided_slice %92 {offsets = [0, 96], sizes = [8, 32], strides = [1, 1]} : vector<8x128xf32> to vector<8x32xf32>
    %108 = arith.negf %107 : vector<8x32xf32>
    %109 = math.exp %108 : vector<8x32xf32>
    %cst_24 = arith.constant 1.000000e+00 : f32
    %110 = vector.broadcast %cst_24 : f32 to vector<8x32xf32>
    %111 = arith.addf %110, %109 : vector<8x32xf32>
    %112 = arith.divf %110, %111 : vector<8x32xf32>
    %113 = arith.mulf %104, %16 : vector<8x32xf32>
    %114 = arith.mulf %98, %106 : vector<8x32xf32>
    %115 = arith.addf %113, %114 : vector<8x32xf32>
    %116 = math.tanh %115 : vector<8x32xf32>
    %117 = arith.mulf %112, %116 : vector<8x32xf32>
    %118 = vector.extract_strided_slice %15 {offsets = [2, 0, 0], sizes = [1, 8, 128], strides = [1, 1, 1]} : vector<8x8x128xf32> to vector<1x8x128xf32>
    %119 = vector.shape_cast %118 : vector<1x8x128xf32> to vector<8x128xf32>
    %120 = vector.extract_strided_slice %3 {offsets = [0, 0, 0], sizes = [1, 32, 128], strides = [1, 1, 1]} : vector<2x32x128xbf16> to vector<1x32x128xbf16>
    %121 = vector.shape_cast %120 : vector<1x32x128xbf16> to vector<32x128xbf16>
    %122 = arith.truncf %80 : vector<8x32xf32> to vector<8x32xbf16>
    %cst_25 = arith.constant dense<0.000000e+00> : vector<8x128xf32>
    %123 = tpu.matmul %122, %121, %cst_25 {dimension_numbers = #tpu.dot_dimension_numbers<[1], [0], [0], [1], [0, 0, 1, 1], [], []>} : vector<8x32xbf16>, vector<32x128xbf16>, vector<8x128xf32> -> vector<8x128xf32>
    %124 = arith.addf %119, %123 : vector<8x128xf32>
    %125 = vector.extract_strided_slice %124 {offsets = [0, 0], sizes = [8, 32], strides = [1, 1]} : vector<8x128xf32> to vector<8x32xf32>
    %126 = arith.negf %125 : vector<8x32xf32>
    %127 = math.exp %126 : vector<8x32xf32>
    %cst_26 = arith.constant 1.000000e+00 : f32
    %128 = vector.broadcast %cst_26 : f32 to vector<8x32xf32>
    %129 = arith.addf %128, %127 : vector<8x32xf32>
    %130 = arith.divf %128, %129 : vector<8x32xf32>
    %131 = vector.extract_strided_slice %124 {offsets = [0, 32], sizes = [8, 32], strides = [1, 1]} : vector<8x128xf32> to vector<8x32xf32>
    %132 = arith.negf %131 : vector<8x32xf32>
    %133 = math.exp %132 : vector<8x32xf32>
    %cst_27 = arith.constant 1.000000e+00 : f32
    %134 = vector.broadcast %cst_27 : f32 to vector<8x32xf32>
    %135 = arith.addf %134, %133 : vector<8x32xf32>
    %136 = arith.divf %134, %135 : vector<8x32xf32>
    %137 = vector.extract_strided_slice %124 {offsets = [0, 64], sizes = [8, 32], strides = [1, 1]} : vector<8x128xf32> to vector<8x32xf32>
    %138 = math.tanh %137 : vector<8x32xf32>
    %139 = vector.extract_strided_slice %124 {offsets = [0, 96], sizes = [8, 32], strides = [1, 1]} : vector<8x128xf32> to vector<8x32xf32>
    %140 = arith.negf %139 : vector<8x32xf32>
    %141 = math.exp %140 : vector<8x32xf32>
    %cst_28 = arith.constant 1.000000e+00 : f32
    %142 = vector.broadcast %cst_28 : f32 to vector<8x32xf32>
    %143 = arith.addf %142, %141 : vector<8x32xf32>
    %144 = arith.divf %142, %143 : vector<8x32xf32>
    %145 = arith.mulf %136, %78 : vector<8x32xf32>
    %146 = arith.mulf %130, %138 : vector<8x32xf32>
    %147 = arith.addf %145, %146 : vector<8x32xf32>
    %148 = math.tanh %147 : vector<8x32xf32>
    %149 = arith.mulf %144, %148 : vector<8x32xf32>
    %150 = vector.shape_cast %2 : vector<1x32x128xbf16> to vector<32x128xbf16>
    %151 = arith.truncf %80 : vector<8x32xf32> to vector<8x32xbf16>
    %cst_29 = arith.constant dense<0.000000e+00> : vector<8x128xf32>
    %152 = tpu.matmul %151, %150, %cst_29 {dimension_numbers = #tpu.dot_dimension_numbers<[1], [0], [0], [1], [0, 0, 1, 1], [], []>} : vector<8x32xbf16>, vector<32x128xbf16>, vector<8x128xf32> -> vector<8x128xf32>
    %153 = vector.extract_strided_slice %4 {offsets = [1, 0, 0], sizes = [1, 1, 128], strides = [1, 1, 1]} : vector<2x1x128xf32> to vector<1x1x128xf32>
    %154 = vector.shape_cast %153 : vector<1x1x128xf32> to vector<1x128xf32>
    %155 = vector.broadcast %154 : vector<1x128xf32> to vector<8x128xf32>
    %156 = arith.addf %152, %155 : vector<8x128xf32>
    %157 = vector.extract_strided_slice %3 {offsets = [1, 0, 0], sizes = [1, 32, 128], strides = [1, 1, 1]} : vector<2x32x128xbf16> to vector<1x32x128xbf16>
    %158 = vector.shape_cast %157 : vector<1x32x128xbf16> to vector<32x128xbf16>
    %159 = arith.truncf %117 : vector<8x32xf32> to vector<8x32xbf16>
    %cst_30 = arith.constant dense<0.000000e+00> : vector<8x128xf32>
    %160 = tpu.matmul %159, %158, %cst_30 {dimension_numbers = #tpu.dot_dimension_numbers<[1], [0], [0], [1], [0, 0, 1, 1], [], []>} : vector<8x32xbf16>, vector<32x128xbf16>, vector<8x128xf32> -> vector<8x128xf32>
    %161 = arith.addf %156, %160 : vector<8x128xf32>
    %162 = vector.extract_strided_slice %161 {offsets = [0, 0], sizes = [8, 32], strides = [1, 1]} : vector<8x128xf32> to vector<8x32xf32>
    %163 = arith.negf %162 : vector<8x32xf32>
    %164 = math.exp %163 : vector<8x32xf32>
    %cst_31 = arith.constant 1.000000e+00 : f32
    %165 = vector.broadcast %cst_31 : f32 to vector<8x32xf32>
    %166 = arith.addf %165, %164 : vector<8x32xf32>
    %167 = arith.divf %165, %166 : vector<8x32xf32>
    %168 = vector.extract_strided_slice %161 {offsets = [0, 32], sizes = [8, 32], strides = [1, 1]} : vector<8x128xf32> to vector<8x32xf32>
    %169 = arith.negf %168 : vector<8x32xf32>
    %170 = math.exp %169 : vector<8x32xf32>
    %cst_32 = arith.constant 1.000000e+00 : f32
    %171 = vector.broadcast %cst_32 : f32 to vector<8x32xf32>
    %172 = arith.addf %171, %170 : vector<8x32xf32>
    %173 = arith.divf %171, %172 : vector<8x32xf32>
    %174 = vector.extract_strided_slice %161 {offsets = [0, 64], sizes = [8, 32], strides = [1, 1]} : vector<8x128xf32> to vector<8x32xf32>
    %175 = math.tanh %174 : vector<8x32xf32>
    %176 = vector.extract_strided_slice %161 {offsets = [0, 96], sizes = [8, 32], strides = [1, 1]} : vector<8x128xf32> to vector<8x32xf32>
    %177 = arith.negf %176 : vector<8x32xf32>
    %178 = math.exp %177 : vector<8x32xf32>
    %cst_33 = arith.constant 1.000000e+00 : f32
    %179 = vector.broadcast %cst_33 : f32 to vector<8x32xf32>
    %180 = arith.addf %179, %178 : vector<8x32xf32>
    %181 = arith.divf %179, %180 : vector<8x32xf32>
    %182 = arith.mulf %173, %115 : vector<8x32xf32>
    %183 = arith.mulf %167, %175 : vector<8x32xf32>
    %184 = arith.addf %182, %183 : vector<8x32xf32>
    %185 = math.tanh %184 : vector<8x32xf32>
    %186 = arith.mulf %181, %185 : vector<8x32xf32>
    %187 = vector.extract_strided_slice %15 {offsets = [3, 0, 0], sizes = [1, 8, 128], strides = [1, 1, 1]} : vector<8x8x128xf32> to vector<1x8x128xf32>
    %188 = vector.shape_cast %187 : vector<1x8x128xf32> to vector<8x128xf32>
    %189 = vector.extract_strided_slice %3 {offsets = [0, 0, 0], sizes = [1, 32, 128], strides = [1, 1, 1]} : vector<2x32x128xbf16> to vector<1x32x128xbf16>
    %190 = vector.shape_cast %189 : vector<1x32x128xbf16> to vector<32x128xbf16>
    %191 = arith.truncf %149 : vector<8x32xf32> to vector<8x32xbf16>
    %cst_34 = arith.constant dense<0.000000e+00> : vector<8x128xf32>
    %192 = tpu.matmul %191, %190, %cst_34 {dimension_numbers = #tpu.dot_dimension_numbers<[1], [0], [0], [1], [0, 0, 1, 1], [], []>} : vector<8x32xbf16>, vector<32x128xbf16>, vector<8x128xf32> -> vector<8x128xf32>
    %193 = arith.addf %188, %192 : vector<8x128xf32>
    %194 = vector.extract_strided_slice %193 {offsets = [0, 0], sizes = [8, 32], strides = [1, 1]} : vector<8x128xf32> to vector<8x32xf32>
    %195 = arith.negf %194 : vector<8x32xf32>
    %196 = math.exp %195 : vector<8x32xf32>
    %cst_35 = arith.constant 1.000000e+00 : f32
    %197 = vector.broadcast %cst_35 : f32 to vector<8x32xf32>
    %198 = arith.addf %197, %196 : vector<8x32xf32>
    %199 = arith.divf %197, %198 : vector<8x32xf32>
    %200 = vector.extract_strided_slice %193 {offsets = [0, 32], sizes = [8, 32], strides = [1, 1]} : vector<8x128xf32> to vector<8x32xf32>
    %201 = arith.negf %200 : vector<8x32xf32>
    %202 = math.exp %201 : vector<8x32xf32>
    %cst_36 = arith.constant 1.000000e+00 : f32
    %203 = vector.broadcast %cst_36 : f32 to vector<8x32xf32>
    %204 = arith.addf %203, %202 : vector<8x32xf32>
    %205 = arith.divf %203, %204 : vector<8x32xf32>
    %206 = vector.extract_strided_slice %193 {offsets = [0, 64], sizes = [8, 32], strides = [1, 1]} : vector<8x128xf32> to vector<8x32xf32>
    %207 = math.tanh %206 : vector<8x32xf32>
    %208 = vector.extract_strided_slice %193 {offsets = [0, 96], sizes = [8, 32], strides = [1, 1]} : vector<8x128xf32> to vector<8x32xf32>
    %209 = arith.negf %208 : vector<8x32xf32>
    %210 = math.exp %209 : vector<8x32xf32>
    %cst_37 = arith.constant 1.000000e+00 : f32
    %211 = vector.broadcast %cst_37 : f32 to vector<8x32xf32>
    %212 = arith.addf %211, %210 : vector<8x32xf32>
    %213 = arith.divf %211, %212 : vector<8x32xf32>
    %214 = arith.mulf %205, %147 : vector<8x32xf32>
    %215 = arith.mulf %199, %207 : vector<8x32xf32>
    %216 = arith.addf %214, %215 : vector<8x32xf32>
    %217 = math.tanh %216 : vector<8x32xf32>
    %218 = arith.mulf %213, %217 : vector<8x32xf32>
    %219 = vector.shape_cast %2 : vector<1x32x128xbf16> to vector<32x128xbf16>
    %220 = arith.truncf %149 : vector<8x32xf32> to vector<8x32xbf16>
    %cst_38 = arith.constant dense<0.000000e+00> : vector<8x128xf32>
    %221 = tpu.matmul %220, %219, %cst_38 {dimension_numbers = #tpu.dot_dimension_numbers<[1], [0], [0], [1], [0, 0, 1, 1], [], []>} : vector<8x32xbf16>, vector<32x128xbf16>, vector<8x128xf32> -> vector<8x128xf32>
    %222 = vector.extract_strided_slice %4 {offsets = [1, 0, 0], sizes = [1, 1, 128], strides = [1, 1, 1]} : vector<2x1x128xf32> to vector<1x1x128xf32>
    %223 = vector.shape_cast %222 : vector<1x1x128xf32> to vector<1x128xf32>
    %224 = vector.broadcast %223 : vector<1x128xf32> to vector<8x128xf32>
    %225 = arith.addf %221, %224 : vector<8x128xf32>
    %226 = vector.extract_strided_slice %3 {offsets = [1, 0, 0], sizes = [1, 32, 128], strides = [1, 1, 1]} : vector<2x32x128xbf16> to vector<1x32x128xbf16>
    %227 = vector.shape_cast %226 : vector<1x32x128xbf16> to vector<32x128xbf16>
    %228 = arith.truncf %186 : vector<8x32xf32> to vector<8x32xbf16>
    %cst_39 = arith.constant dense<0.000000e+00> : vector<8x128xf32>
    %229 = tpu.matmul %228, %227, %cst_39 {dimension_numbers = #tpu.dot_dimension_numbers<[1], [0], [0], [1], [0, 0, 1, 1], [], []>} : vector<8x32xbf16>, vector<32x128xbf16>, vector<8x128xf32> -> vector<8x128xf32>
    %230 = arith.addf %225, %229 : vector<8x128xf32>
    %231 = vector.extract_strided_slice %230 {offsets = [0, 0], sizes = [8, 32], strides = [1, 1]} : vector<8x128xf32> to vector<8x32xf32>
    %232 = arith.negf %231 : vector<8x32xf32>
    %233 = math.exp %232 : vector<8x32xf32>
    %cst_40 = arith.constant 1.000000e+00 : f32
    %234 = vector.broadcast %cst_40 : f32 to vector<8x32xf32>
    %235 = arith.addf %234, %233 : vector<8x32xf32>
    %236 = arith.divf %234, %235 : vector<8x32xf32>
    %237 = vector.extract_strided_slice %230 {offsets = [0, 32], sizes = [8, 32], strides = [1, 1]} : vector<8x128xf32> to vector<8x32xf32>
    %238 = arith.negf %237 : vector<8x32xf32>
    %239 = math.exp %238 : vector<8x32xf32>
    %cst_41 = arith.constant 1.000000e+00 : f32
    %240 = vector.broadcast %cst_41 : f32 to vector<8x32xf32>
    %241 = arith.addf %240, %239 : vector<8x32xf32>
    %242 = arith.divf %240, %241 : vector<8x32xf32>
    %243 = vector.extract_strided_slice %230 {offsets = [0, 64], sizes = [8, 32], strides = [1, 1]} : vector<8x128xf32> to vector<8x32xf32>
    %244 = math.tanh %243 : vector<8x32xf32>
    %245 = vector.extract_strided_slice %230 {offsets = [0, 96], sizes = [8, 32], strides = [1, 1]} : vector<8x128xf32> to vector<8x32xf32>
    %246 = arith.negf %245 : vector<8x32xf32>
    %247 = math.exp %246 : vector<8x32xf32>
    %cst_42 = arith.constant 1.000000e+00 : f32
    %248 = vector.broadcast %cst_42 : f32 to vector<8x32xf32>
    %249 = arith.addf %248, %247 : vector<8x32xf32>
    %250 = arith.divf %248, %249 : vector<8x32xf32>
    %251 = arith.mulf %242, %184 : vector<8x32xf32>
    %252 = arith.mulf %236, %244 : vector<8x32xf32>
    %253 = arith.addf %251, %252 : vector<8x32xf32>
    %254 = math.tanh %253 : vector<8x32xf32>
    %255 = arith.mulf %250, %254 : vector<8x32xf32>
    %256 = vector.extract_strided_slice %15 {offsets = [4, 0, 0], sizes = [1, 8, 128], strides = [1, 1, 1]} : vector<8x8x128xf32> to vector<1x8x128xf32>
    %257 = vector.shape_cast %256 : vector<1x8x128xf32> to vector<8x128xf32>
    %258 = vector.extract_strided_slice %3 {offsets = [0, 0, 0], sizes = [1, 32, 128], strides = [1, 1, 1]} : vector<2x32x128xbf16> to vector<1x32x128xbf16>
    %259 = vector.shape_cast %258 : vector<1x32x128xbf16> to vector<32x128xbf16>
    %260 = arith.truncf %218 : vector<8x32xf32> to vector<8x32xbf16>
    %cst_43 = arith.constant dense<0.000000e+00> : vector<8x128xf32>
    %261 = tpu.matmul %260, %259, %cst_43 {dimension_numbers = #tpu.dot_dimension_numbers<[1], [0], [0], [1], [0, 0, 1, 1], [], []>} : vector<8x32xbf16>, vector<32x128xbf16>, vector<8x128xf32> -> vector<8x128xf32>
    %262 = arith.addf %257, %261 : vector<8x128xf32>
    %263 = vector.extract_strided_slice %262 {offsets = [0, 0], sizes = [8, 32], strides = [1, 1]} : vector<8x128xf32> to vector<8x32xf32>
    %264 = arith.negf %263 : vector<8x32xf32>
    %265 = math.exp %264 : vector<8x32xf32>
    %cst_44 = arith.constant 1.000000e+00 : f32
    %266 = vector.broadcast %cst_44 : f32 to vector<8x32xf32>
    %267 = arith.addf %266, %265 : vector<8x32xf32>
    %268 = arith.divf %266, %267 : vector<8x32xf32>
    %269 = vector.extract_strided_slice %262 {offsets = [0, 32], sizes = [8, 32], strides = [1, 1]} : vector<8x128xf32> to vector<8x32xf32>
    %270 = arith.negf %269 : vector<8x32xf32>
    %271 = math.exp %270 : vector<8x32xf32>
    %cst_45 = arith.constant 1.000000e+00 : f32
    %272 = vector.broadcast %cst_45 : f32 to vector<8x32xf32>
    %273 = arith.addf %272, %271 : vector<8x32xf32>
    %274 = arith.divf %272, %273 : vector<8x32xf32>
    %275 = vector.extract_strided_slice %262 {offsets = [0, 64], sizes = [8, 32], strides = [1, 1]} : vector<8x128xf32> to vector<8x32xf32>
    %276 = math.tanh %275 : vector<8x32xf32>
    %277 = vector.extract_strided_slice %262 {offsets = [0, 96], sizes = [8, 32], strides = [1, 1]} : vector<8x128xf32> to vector<8x32xf32>
    %278 = arith.negf %277 : vector<8x32xf32>
    %279 = math.exp %278 : vector<8x32xf32>
    %cst_46 = arith.constant 1.000000e+00 : f32
    %280 = vector.broadcast %cst_46 : f32 to vector<8x32xf32>
    %281 = arith.addf %280, %279 : vector<8x32xf32>
    %282 = arith.divf %280, %281 : vector<8x32xf32>
    %283 = arith.mulf %274, %216 : vector<8x32xf32>
    %284 = arith.mulf %268, %276 : vector<8x32xf32>
    %285 = arith.addf %283, %284 : vector<8x32xf32>
    %286 = math.tanh %285 : vector<8x32xf32>
    %287 = arith.mulf %282, %286 : vector<8x32xf32>
    %288 = vector.shape_cast %2 : vector<1x32x128xbf16> to vector<32x128xbf16>
    %289 = arith.truncf %218 : vector<8x32xf32> to vector<8x32xbf16>
    %cst_47 = arith.constant dense<0.000000e+00> : vector<8x128xf32>
    %290 = tpu.matmul %289, %288, %cst_47 {dimension_numbers = #tpu.dot_dimension_numbers<[1], [0], [0], [1], [0, 0, 1, 1], [], []>} : vector<8x32xbf16>, vector<32x128xbf16>, vector<8x128xf32> -> vector<8x128xf32>
    %291 = vector.extract_strided_slice %4 {offsets = [1, 0, 0], sizes = [1, 1, 128], strides = [1, 1, 1]} : vector<2x1x128xf32> to vector<1x1x128xf32>
    %292 = vector.shape_cast %291 : vector<1x1x128xf32> to vector<1x128xf32>
    %293 = vector.broadcast %292 : vector<1x128xf32> to vector<8x128xf32>
    %294 = arith.addf %290, %293 : vector<8x128xf32>
    %295 = vector.extract_strided_slice %3 {offsets = [1, 0, 0], sizes = [1, 32, 128], strides = [1, 1, 1]} : vector<2x32x128xbf16> to vector<1x32x128xbf16>
    %296 = vector.shape_cast %295 : vector<1x32x128xbf16> to vector<32x128xbf16>
    %297 = arith.truncf %255 : vector<8x32xf32> to vector<8x32xbf16>
    %cst_48 = arith.constant dense<0.000000e+00> : vector<8x128xf32>
    %298 = tpu.matmul %297, %296, %cst_48 {dimension_numbers = #tpu.dot_dimension_numbers<[1], [0], [0], [1], [0, 0, 1, 1], [], []>} : vector<8x32xbf16>, vector<32x128xbf16>, vector<8x128xf32> -> vector<8x128xf32>
    %299 = arith.addf %294, %298 : vector<8x128xf32>
    %300 = vector.extract_strided_slice %299 {offsets = [0, 0], sizes = [8, 32], strides = [1, 1]} : vector<8x128xf32> to vector<8x32xf32>
    %301 = arith.negf %300 : vector<8x32xf32>
    %302 = math.exp %301 : vector<8x32xf32>
    %cst_49 = arith.constant 1.000000e+00 : f32
    %303 = vector.broadcast %cst_49 : f32 to vector<8x32xf32>
    %304 = arith.addf %303, %302 : vector<8x32xf32>
    %305 = arith.divf %303, %304 : vector<8x32xf32>
    %306 = vector.extract_strided_slice %299 {offsets = [0, 32], sizes = [8, 32], strides = [1, 1]} : vector<8x128xf32> to vector<8x32xf32>
    %307 = arith.negf %306 : vector<8x32xf32>
    %308 = math.exp %307 : vector<8x32xf32>
    %cst_50 = arith.constant 1.000000e+00 : f32
    %309 = vector.broadcast %cst_50 : f32 to vector<8x32xf32>
    %310 = arith.addf %309, %308 : vector<8x32xf32>
    %311 = arith.divf %309, %310 : vector<8x32xf32>
    %312 = vector.extract_strided_slice %299 {offsets = [0, 64], sizes = [8, 32], strides = [1, 1]} : vector<8x128xf32> to vector<8x32xf32>
    %313 = math.tanh %312 : vector<8x32xf32>
    %314 = vector.extract_strided_slice %299 {offsets = [0, 96], sizes = [8, 32], strides = [1, 1]} : vector<8x128xf32> to vector<8x32xf32>
    %315 = arith.negf %314 : vector<8x32xf32>
    %316 = math.exp %315 : vector<8x32xf32>
    %cst_51 = arith.constant 1.000000e+00 : f32
    %317 = vector.broadcast %cst_51 : f32 to vector<8x32xf32>
    %318 = arith.addf %317, %316 : vector<8x32xf32>
    %319 = arith.divf %317, %318 : vector<8x32xf32>
    %320 = arith.mulf %311, %253 : vector<8x32xf32>
    %321 = arith.mulf %305, %313 : vector<8x32xf32>
    %322 = arith.addf %320, %321 : vector<8x32xf32>
    %323 = math.tanh %322 : vector<8x32xf32>
    %324 = arith.mulf %319, %323 : vector<8x32xf32>
    %325 = vector.extract_strided_slice %15 {offsets = [5, 0, 0], sizes = [1, 8, 128], strides = [1, 1, 1]} : vector<8x8x128xf32> to vector<1x8x128xf32>
    %326 = vector.shape_cast %325 : vector<1x8x128xf32> to vector<8x128xf32>
    %327 = vector.extract_strided_slice %3 {offsets = [0, 0, 0], sizes = [1, 32, 128], strides = [1, 1, 1]} : vector<2x32x128xbf16> to vector<1x32x128xbf16>
    %328 = vector.shape_cast %327 : vector<1x32x128xbf16> to vector<32x128xbf16>
    %329 = arith.truncf %287 : vector<8x32xf32> to vector<8x32xbf16>
    %cst_52 = arith.constant dense<0.000000e+00> : vector<8x128xf32>
    %330 = tpu.matmul %329, %328, %cst_52 {dimension_numbers = #tpu.dot_dimension_numbers<[1], [0], [0], [1], [0, 0, 1, 1], [], []>} : vector<8x32xbf16>, vector<32x128xbf16>, vector<8x128xf32> -> vector<8x128xf32>
    %331 = arith.addf %326, %330 : vector<8x128xf32>
    %332 = vector.extract_strided_slice %331 {offsets = [0, 0], sizes = [8, 32], strides = [1, 1]} : vector<8x128xf32> to vector<8x32xf32>
    %333 = arith.negf %332 : vector<8x32xf32>
    %334 = math.exp %333 : vector<8x32xf32>
    %cst_53 = arith.constant 1.000000e+00 : f32
    %335 = vector.broadcast %cst_53 : f32 to vector<8x32xf32>
    %336 = arith.addf %335, %334 : vector<8x32xf32>
    %337 = arith.divf %335, %336 : vector<8x32xf32>
    %338 = vector.extract_strided_slice %331 {offsets = [0, 32], sizes = [8, 32], strides = [1, 1]} : vector<8x128xf32> to vector<8x32xf32>
    %339 = arith.negf %338 : vector<8x32xf32>
    %340 = math.exp %339 : vector<8x32xf32>
    %cst_54 = arith.constant 1.000000e+00 : f32
    %341 = vector.broadcast %cst_54 : f32 to vector<8x32xf32>
    %342 = arith.addf %341, %340 : vector<8x32xf32>
    %343 = arith.divf %341, %342 : vector<8x32xf32>
    %344 = vector.extract_strided_slice %331 {offsets = [0, 64], sizes = [8, 32], strides = [1, 1]} : vector<8x128xf32> to vector<8x32xf32>
    %345 = math.tanh %344 : vector<8x32xf32>
    %346 = vector.extract_strided_slice %331 {offsets = [0, 96], sizes = [8, 32], strides = [1, 1]} : vector<8x128xf32> to vector<8x32xf32>
    %347 = arith.negf %346 : vector<8x32xf32>
    %348 = math.exp %347 : vector<8x32xf32>
    %cst_55 = arith.constant 1.000000e+00 : f32
    %349 = vector.broadcast %cst_55 : f32 to vector<8x32xf32>
    %350 = arith.addf %349, %348 : vector<8x32xf32>
    %351 = arith.divf %349, %350 : vector<8x32xf32>
    %352 = arith.mulf %343, %285 : vector<8x32xf32>
    %353 = arith.mulf %337, %345 : vector<8x32xf32>
    %354 = arith.addf %352, %353 : vector<8x32xf32>
    %355 = math.tanh %354 : vector<8x32xf32>
    %356 = arith.mulf %351, %355 : vector<8x32xf32>
    %357 = vector.shape_cast %2 : vector<1x32x128xbf16> to vector<32x128xbf16>
    %358 = arith.truncf %287 : vector<8x32xf32> to vector<8x32xbf16>
    %cst_56 = arith.constant dense<0.000000e+00> : vector<8x128xf32>
    %359 = tpu.matmul %358, %357, %cst_56 {dimension_numbers = #tpu.dot_dimension_numbers<[1], [0], [0], [1], [0, 0, 1, 1], [], []>} : vector<8x32xbf16>, vector<32x128xbf16>, vector<8x128xf32> -> vector<8x128xf32>
    %360 = vector.extract_strided_slice %4 {offsets = [1, 0, 0], sizes = [1, 1, 128], strides = [1, 1, 1]} : vector<2x1x128xf32> to vector<1x1x128xf32>
    %361 = vector.shape_cast %360 : vector<1x1x128xf32> to vector<1x128xf32>
    %362 = vector.broadcast %361 : vector<1x128xf32> to vector<8x128xf32>
    %363 = arith.addf %359, %362 : vector<8x128xf32>
    %364 = vector.extract_strided_slice %3 {offsets = [1, 0, 0], sizes = [1, 32, 128], strides = [1, 1, 1]} : vector<2x32x128xbf16> to vector<1x32x128xbf16>
    %365 = vector.shape_cast %364 : vector<1x32x128xbf16> to vector<32x128xbf16>
    %366 = arith.truncf %324 : vector<8x32xf32> to vector<8x32xbf16>
    %cst_57 = arith.constant dense<0.000000e+00> : vector<8x128xf32>
    %367 = tpu.matmul %366, %365, %cst_57 {dimension_numbers = #tpu.dot_dimension_numbers<[1], [0], [0], [1], [0, 0, 1, 1], [], []>} : vector<8x32xbf16>, vector<32x128xbf16>, vector<8x128xf32> -> vector<8x128xf32>
    %368 = arith.addf %363, %367 : vector<8x128xf32>
    %369 = vector.extract_strided_slice %368 {offsets = [0, 0], sizes = [8, 32], strides = [1, 1]} : vector<8x128xf32> to vector<8x32xf32>
    %370 = arith.negf %369 : vector<8x32xf32>
    %371 = math.exp %370 : vector<8x32xf32>
    %cst_58 = arith.constant 1.000000e+00 : f32
    %372 = vector.broadcast %cst_58 : f32 to vector<8x32xf32>
    %373 = arith.addf %372, %371 : vector<8x32xf32>
    %374 = arith.divf %372, %373 : vector<8x32xf32>
    %375 = vector.extract_strided_slice %368 {offsets = [0, 32], sizes = [8, 32], strides = [1, 1]} : vector<8x128xf32> to vector<8x32xf32>
    %376 = arith.negf %375 : vector<8x32xf32>
    %377 = math.exp %376 : vector<8x32xf32>
    %cst_59 = arith.constant 1.000000e+00 : f32
    %378 = vector.broadcast %cst_59 : f32 to vector<8x32xf32>
    %379 = arith.addf %378, %377 : vector<8x32xf32>
    %380 = arith.divf %378, %379 : vector<8x32xf32>
    %381 = vector.extract_strided_slice %368 {offsets = [0, 64], sizes = [8, 32], strides = [1, 1]} : vector<8x128xf32> to vector<8x32xf32>
    %382 = math.tanh %381 : vector<8x32xf32>
    %383 = vector.extract_strided_slice %368 {offsets = [0, 96], sizes = [8, 32], strides = [1, 1]} : vector<8x128xf32> to vector<8x32xf32>
    %384 = arith.negf %383 : vector<8x32xf32>
    %385 = math.exp %384 : vector<8x32xf32>
    %cst_60 = arith.constant 1.000000e+00 : f32
    %386 = vector.broadcast %cst_60 : f32 to vector<8x32xf32>
    %387 = arith.addf %386, %385 : vector<8x32xf32>
    %388 = arith.divf %386, %387 : vector<8x32xf32>
    %389 = arith.mulf %380, %322 : vector<8x32xf32>
    %390 = arith.mulf %374, %382 : vector<8x32xf32>
    %391 = arith.addf %389, %390 : vector<8x32xf32>
    %392 = math.tanh %391 : vector<8x32xf32>
    %393 = arith.mulf %388, %392 : vector<8x32xf32>
    %394 = vector.extract_strided_slice %15 {offsets = [6, 0, 0], sizes = [1, 8, 128], strides = [1, 1, 1]} : vector<8x8x128xf32> to vector<1x8x128xf32>
    %395 = vector.shape_cast %394 : vector<1x8x128xf32> to vector<8x128xf32>
    %396 = vector.extract_strided_slice %3 {offsets = [0, 0, 0], sizes = [1, 32, 128], strides = [1, 1, 1]} : vector<2x32x128xbf16> to vector<1x32x128xbf16>
    %397 = vector.shape_cast %396 : vector<1x32x128xbf16> to vector<32x128xbf16>
    %398 = arith.truncf %356 : vector<8x32xf32> to vector<8x32xbf16>
    %cst_61 = arith.constant dense<0.000000e+00> : vector<8x128xf32>
    %399 = tpu.matmul %398, %397, %cst_61 {dimension_numbers = #tpu.dot_dimension_numbers<[1], [0], [0], [1], [0, 0, 1, 1], [], []>} : vector<8x32xbf16>, vector<32x128xbf16>, vector<8x128xf32> -> vector<8x128xf32>
    %400 = arith.addf %395, %399 : vector<8x128xf32>
    %401 = vector.extract_strided_slice %400 {offsets = [0, 0], sizes = [8, 32], strides = [1, 1]} : vector<8x128xf32> to vector<8x32xf32>
    %402 = arith.negf %401 : vector<8x32xf32>
    %403 = math.exp %402 : vector<8x32xf32>
    %cst_62 = arith.constant 1.000000e+00 : f32
    %404 = vector.broadcast %cst_62 : f32 to vector<8x32xf32>
    %405 = arith.addf %404, %403 : vector<8x32xf32>
    %406 = arith.divf %404, %405 : vector<8x32xf32>
    %407 = vector.extract_strided_slice %400 {offsets = [0, 32], sizes = [8, 32], strides = [1, 1]} : vector<8x128xf32> to vector<8x32xf32>
    %408 = arith.negf %407 : vector<8x32xf32>
    %409 = math.exp %408 : vector<8x32xf32>
    %cst_63 = arith.constant 1.000000e+00 : f32
    %410 = vector.broadcast %cst_63 : f32 to vector<8x32xf32>
    %411 = arith.addf %410, %409 : vector<8x32xf32>
    %412 = arith.divf %410, %411 : vector<8x32xf32>
    %413 = vector.extract_strided_slice %400 {offsets = [0, 64], sizes = [8, 32], strides = [1, 1]} : vector<8x128xf32> to vector<8x32xf32>
    %414 = math.tanh %413 : vector<8x32xf32>
    %415 = vector.extract_strided_slice %400 {offsets = [0, 96], sizes = [8, 32], strides = [1, 1]} : vector<8x128xf32> to vector<8x32xf32>
    %416 = arith.negf %415 : vector<8x32xf32>
    %417 = math.exp %416 : vector<8x32xf32>
    %cst_64 = arith.constant 1.000000e+00 : f32
    %418 = vector.broadcast %cst_64 : f32 to vector<8x32xf32>
    %419 = arith.addf %418, %417 : vector<8x32xf32>
    %420 = arith.divf %418, %419 : vector<8x32xf32>
    %421 = arith.mulf %412, %354 : vector<8x32xf32>
    %422 = arith.mulf %406, %414 : vector<8x32xf32>
    %423 = arith.addf %421, %422 : vector<8x32xf32>
    %424 = math.tanh %423 : vector<8x32xf32>
    %425 = arith.mulf %420, %424 : vector<8x32xf32>
    %426 = vector.shape_cast %2 : vector<1x32x128xbf16> to vector<32x128xbf16>
    %427 = arith.truncf %356 : vector<8x32xf32> to vector<8x32xbf16>
    %cst_65 = arith.constant dense<0.000000e+00> : vector<8x128xf32>
    %428 = tpu.matmul %427, %426, %cst_65 {dimension_numbers = #tpu.dot_dimension_numbers<[1], [0], [0], [1], [0, 0, 1, 1], [], []>} : vector<8x32xbf16>, vector<32x128xbf16>, vector<8x128xf32> -> vector<8x128xf32>
    %429 = vector.extract_strided_slice %4 {offsets = [1, 0, 0], sizes = [1, 1, 128], strides = [1, 1, 1]} : vector<2x1x128xf32> to vector<1x1x128xf32>
    %430 = vector.shape_cast %429 : vector<1x1x128xf32> to vector<1x128xf32>
    %431 = vector.broadcast %430 : vector<1x128xf32> to vector<8x128xf32>
    %432 = arith.addf %428, %431 : vector<8x128xf32>
    %433 = vector.extract_strided_slice %3 {offsets = [1, 0, 0], sizes = [1, 32, 128], strides = [1, 1, 1]} : vector<2x32x128xbf16> to vector<1x32x128xbf16>
    %434 = vector.shape_cast %433 : vector<1x32x128xbf16> to vector<32x128xbf16>
    %435 = arith.truncf %393 : vector<8x32xf32> to vector<8x32xbf16>
    %cst_66 = arith.constant dense<0.000000e+00> : vector<8x128xf32>
    %436 = tpu.matmul %435, %434, %cst_66 {dimension_numbers = #tpu.dot_dimension_numbers<[1], [0], [0], [1], [0, 0, 1, 1], [], []>} : vector<8x32xbf16>, vector<32x128xbf16>, vector<8x128xf32> -> vector<8x128xf32>
    %437 = arith.addf %432, %436 : vector<8x128xf32>
    %438 = vector.extract_strided_slice %437 {offsets = [0, 0], sizes = [8, 32], strides = [1, 1]} : vector<8x128xf32> to vector<8x32xf32>
    %439 = arith.negf %438 : vector<8x32xf32>
    %440 = math.exp %439 : vector<8x32xf32>
    %cst_67 = arith.constant 1.000000e+00 : f32
    %441 = vector.broadcast %cst_67 : f32 to vector<8x32xf32>
    %442 = arith.addf %441, %440 : vector<8x32xf32>
    %443 = arith.divf %441, %442 : vector<8x32xf32>
    %444 = vector.extract_strided_slice %437 {offsets = [0, 32], sizes = [8, 32], strides = [1, 1]} : vector<8x128xf32> to vector<8x32xf32>
    %445 = arith.negf %444 : vector<8x32xf32>
    %446 = math.exp %445 : vector<8x32xf32>
    %cst_68 = arith.constant 1.000000e+00 : f32
    %447 = vector.broadcast %cst_68 : f32 to vector<8x32xf32>
    %448 = arith.addf %447, %446 : vector<8x32xf32>
    %449 = arith.divf %447, %448 : vector<8x32xf32>
    %450 = vector.extract_strided_slice %437 {offsets = [0, 64], sizes = [8, 32], strides = [1, 1]} : vector<8x128xf32> to vector<8x32xf32>
    %451 = math.tanh %450 : vector<8x32xf32>
    %452 = vector.extract_strided_slice %437 {offsets = [0, 96], sizes = [8, 32], strides = [1, 1]} : vector<8x128xf32> to vector<8x32xf32>
    %453 = arith.negf %452 : vector<8x32xf32>
    %454 = math.exp %453 : vector<8x32xf32>
    %cst_69 = arith.constant 1.000000e+00 : f32
    %455 = vector.broadcast %cst_69 : f32 to vector<8x32xf32>
    %456 = arith.addf %455, %454 : vector<8x32xf32>
    %457 = arith.divf %455, %456 : vector<8x32xf32>
    %458 = arith.mulf %449, %391 : vector<8x32xf32>
    %459 = arith.mulf %443, %451 : vector<8x32xf32>
    %460 = arith.addf %458, %459 : vector<8x32xf32>
    %461 = math.tanh %460 : vector<8x32xf32>
    %462 = arith.mulf %457, %461 : vector<8x32xf32>
    %463 = vector.extract_strided_slice %15 {offsets = [7, 0, 0], sizes = [1, 8, 128], strides = [1, 1, 1]} : vector<8x8x128xf32> to vector<1x8x128xf32>
    %464 = vector.shape_cast %463 : vector<1x8x128xf32> to vector<8x128xf32>
    %465 = vector.extract_strided_slice %3 {offsets = [0, 0, 0], sizes = [1, 32, 128], strides = [1, 1, 1]} : vector<2x32x128xbf16> to vector<1x32x128xbf16>
    %466 = vector.shape_cast %465 : vector<1x32x128xbf16> to vector<32x128xbf16>
    %467 = arith.truncf %425 : vector<8x32xf32> to vector<8x32xbf16>
    %cst_70 = arith.constant dense<0.000000e+00> : vector<8x128xf32>
    %468 = tpu.matmul %467, %466, %cst_70 {dimension_numbers = #tpu.dot_dimension_numbers<[1], [0], [0], [1], [0, 0, 1, 1], [], []>} : vector<8x32xbf16>, vector<32x128xbf16>, vector<8x128xf32> -> vector<8x128xf32>
    %469 = arith.addf %464, %468 : vector<8x128xf32>
    %470 = vector.extract_strided_slice %469 {offsets = [0, 0], sizes = [8, 32], strides = [1, 1]} : vector<8x128xf32> to vector<8x32xf32>
    %471 = arith.negf %470 : vector<8x32xf32>
    %472 = math.exp %471 : vector<8x32xf32>
    %cst_71 = arith.constant 1.000000e+00 : f32
    %473 = vector.broadcast %cst_71 : f32 to vector<8x32xf32>
    %474 = arith.addf %473, %472 : vector<8x32xf32>
    %475 = arith.divf %473, %474 : vector<8x32xf32>
    %476 = vector.extract_strided_slice %469 {offsets = [0, 32], sizes = [8, 32], strides = [1, 1]} : vector<8x128xf32> to vector<8x32xf32>
    %477 = arith.negf %476 : vector<8x32xf32>
    %478 = math.exp %477 : vector<8x32xf32>
    %cst_72 = arith.constant 1.000000e+00 : f32
    %479 = vector.broadcast %cst_72 : f32 to vector<8x32xf32>
    %480 = arith.addf %479, %478 : vector<8x32xf32>
    %481 = arith.divf %479, %480 : vector<8x32xf32>
    %482 = vector.extract_strided_slice %469 {offsets = [0, 64], sizes = [8, 32], strides = [1, 1]} : vector<8x128xf32> to vector<8x32xf32>
    %483 = math.tanh %482 : vector<8x32xf32>
    %484 = vector.extract_strided_slice %469 {offsets = [0, 96], sizes = [8, 32], strides = [1, 1]} : vector<8x128xf32> to vector<8x32xf32>
    %485 = arith.negf %484 : vector<8x32xf32>
    %486 = math.exp %485 : vector<8x32xf32>
    %cst_73 = arith.constant 1.000000e+00 : f32
    %487 = vector.broadcast %cst_73 : f32 to vector<8x32xf32>
    %488 = arith.addf %487, %486 : vector<8x32xf32>
    %489 = arith.divf %487, %488 : vector<8x32xf32>
    %490 = arith.mulf %481, %423 : vector<8x32xf32>
    %491 = arith.mulf %475, %483 : vector<8x32xf32>
    %492 = arith.addf %490, %491 : vector<8x32xf32>
    %493 = math.tanh %492 : vector<8x32xf32>
    %494 = arith.mulf %489, %493 : vector<8x32xf32>
    %495 = vector.shape_cast %2 : vector<1x32x128xbf16> to vector<32x128xbf16>
    %496 = arith.truncf %425 : vector<8x32xf32> to vector<8x32xbf16>
    %cst_74 = arith.constant dense<0.000000e+00> : vector<8x128xf32>
    %497 = tpu.matmul %496, %495, %cst_74 {dimension_numbers = #tpu.dot_dimension_numbers<[1], [0], [0], [1], [0, 0, 1, 1], [], []>} : vector<8x32xbf16>, vector<32x128xbf16>, vector<8x128xf32> -> vector<8x128xf32>
    %498 = vector.extract_strided_slice %4 {offsets = [1, 0, 0], sizes = [1, 1, 128], strides = [1, 1, 1]} : vector<2x1x128xf32> to vector<1x1x128xf32>
    %499 = vector.shape_cast %498 : vector<1x1x128xf32> to vector<1x128xf32>
    %500 = vector.broadcast %499 : vector<1x128xf32> to vector<8x128xf32>
    %501 = arith.addf %497, %500 : vector<8x128xf32>
    %502 = vector.extract_strided_slice %3 {offsets = [1, 0, 0], sizes = [1, 32, 128], strides = [1, 1, 1]} : vector<2x32x128xbf16> to vector<1x32x128xbf16>
    %503 = vector.shape_cast %502 : vector<1x32x128xbf16> to vector<32x128xbf16>
    %504 = arith.truncf %462 : vector<8x32xf32> to vector<8x32xbf16>
    %cst_75 = arith.constant dense<0.000000e+00> : vector<8x128xf32>
    %505 = tpu.matmul %504, %503, %cst_75 {dimension_numbers = #tpu.dot_dimension_numbers<[1], [0], [0], [1], [0, 0, 1, 1], [], []>} : vector<8x32xbf16>, vector<32x128xbf16>, vector<8x128xf32> -> vector<8x128xf32>
    %506 = arith.addf %501, %505 : vector<8x128xf32>
    %507 = vector.extract_strided_slice %506 {offsets = [0, 0], sizes = [8, 32], strides = [1, 1]} : vector<8x128xf32> to vector<8x32xf32>
    %508 = arith.negf %507 : vector<8x32xf32>
    %509 = math.exp %508 : vector<8x32xf32>
    %cst_76 = arith.constant 1.000000e+00 : f32
    %510 = vector.broadcast %cst_76 : f32 to vector<8x32xf32>
    %511 = arith.addf %510, %509 : vector<8x32xf32>
    %512 = arith.divf %510, %511 : vector<8x32xf32>
    %513 = vector.extract_strided_slice %506 {offsets = [0, 32], sizes = [8, 32], strides = [1, 1]} : vector<8x128xf32> to vector<8x32xf32>
    %514 = arith.negf %513 : vector<8x32xf32>
    %515 = math.exp %514 : vector<8x32xf32>
    %cst_77 = arith.constant 1.000000e+00 : f32
    %516 = vector.broadcast %cst_77 : f32 to vector<8x32xf32>
    %517 = arith.addf %516, %515 : vector<8x32xf32>
    %518 = arith.divf %516, %517 : vector<8x32xf32>
    %519 = vector.extract_strided_slice %506 {offsets = [0, 64], sizes = [8, 32], strides = [1, 1]} : vector<8x128xf32> to vector<8x32xf32>
    %520 = math.tanh %519 : vector<8x32xf32>
    %521 = vector.extract_strided_slice %506 {offsets = [0, 96], sizes = [8, 32], strides = [1, 1]} : vector<8x128xf32> to vector<8x32xf32>
    %522 = arith.negf %521 : vector<8x32xf32>
    %523 = math.exp %522 : vector<8x32xf32>
    %cst_78 = arith.constant 1.000000e+00 : f32
    %524 = vector.broadcast %cst_78 : f32 to vector<8x32xf32>
    %525 = arith.addf %524, %523 : vector<8x32xf32>
    %526 = arith.divf %524, %525 : vector<8x32xf32>
    %527 = arith.mulf %518, %460 : vector<8x32xf32>
    %528 = arith.mulf %512, %520 : vector<8x32xf32>
    %529 = arith.addf %527, %528 : vector<8x32xf32>
    %530 = math.tanh %529 : vector<8x32xf32>
    %531 = arith.mulf %526, %530 : vector<8x32xf32>
    %532 = vector.shape_cast %2 : vector<1x32x128xbf16> to vector<32x128xbf16>
    %533 = arith.truncf %494 : vector<8x32xf32> to vector<8x32xbf16>
    %cst_79 = arith.constant dense<0.000000e+00> : vector<8x128xf32>
    %534 = tpu.matmul %533, %532, %cst_79 {dimension_numbers = #tpu.dot_dimension_numbers<[1], [0], [0], [1], [0, 0, 1, 1], [], []>} : vector<8x32xbf16>, vector<32x128xbf16>, vector<8x128xf32> -> vector<8x128xf32>
    %535 = vector.extract_strided_slice %4 {offsets = [1, 0, 0], sizes = [1, 1, 128], strides = [1, 1, 1]} : vector<2x1x128xf32> to vector<1x1x128xf32>
    %536 = vector.shape_cast %535 : vector<1x1x128xf32> to vector<1x128xf32>
    %537 = vector.broadcast %536 : vector<1x128xf32> to vector<8x128xf32>
    %538 = arith.addf %534, %537 : vector<8x128xf32>
    %539 = vector.extract_strided_slice %3 {offsets = [1, 0, 0], sizes = [1, 32, 128], strides = [1, 1, 1]} : vector<2x32x128xbf16> to vector<1x32x128xbf16>
    %540 = vector.shape_cast %539 : vector<1x32x128xbf16> to vector<32x128xbf16>
    %541 = arith.truncf %531 : vector<8x32xf32> to vector<8x32xbf16>
    %cst_80 = arith.constant dense<0.000000e+00> : vector<8x128xf32>
    %542 = tpu.matmul %541, %540, %cst_80 {dimension_numbers = #tpu.dot_dimension_numbers<[1], [0], [0], [1], [0, 0, 1, 1], [], []>} : vector<8x32xbf16>, vector<32x128xbf16>, vector<8x128xf32> -> vector<8x128xf32>
    %543 = arith.addf %538, %542 : vector<8x128xf32>
    %544 = vector.extract_strided_slice %543 {offsets = [0, 0], sizes = [8, 32], strides = [1, 1]} : vector<8x128xf32> to vector<8x32xf32>
    %545 = arith.negf %544 : vector<8x32xf32>
    %546 = math.exp %545 : vector<8x32xf32>
    %cst_81 = arith.constant 1.000000e+00 : f32
    %547 = vector.broadcast %cst_81 : f32 to vector<8x32xf32>
    %548 = arith.addf %547, %546 : vector<8x32xf32>
    %549 = arith.divf %547, %548 : vector<8x32xf32>
    %550 = vector.extract_strided_slice %543 {offsets = [0, 32], sizes = [8, 32], strides = [1, 1]} : vector<8x128xf32> to vector<8x32xf32>
    %551 = arith.negf %550 : vector<8x32xf32>
    %552 = math.exp %551 : vector<8x32xf32>
    %cst_82 = arith.constant 1.000000e+00 : f32
    %553 = vector.broadcast %cst_82 : f32 to vector<8x32xf32>
    %554 = arith.addf %553, %552 : vector<8x32xf32>
    %555 = arith.divf %553, %554 : vector<8x32xf32>
    %556 = vector.extract_strided_slice %543 {offsets = [0, 64], sizes = [8, 32], strides = [1, 1]} : vector<8x128xf32> to vector<8x32xf32>
    %557 = math.tanh %556 : vector<8x32xf32>
    %558 = vector.extract_strided_slice %543 {offsets = [0, 96], sizes = [8, 32], strides = [1, 1]} : vector<8x128xf32> to vector<8x32xf32>
    %559 = arith.negf %558 : vector<8x32xf32>
    %560 = math.exp %559 : vector<8x32xf32>
    %cst_83 = arith.constant 1.000000e+00 : f32
    %561 = vector.broadcast %cst_83 : f32 to vector<8x32xf32>
    %562 = arith.addf %561, %560 : vector<8x32xf32>
    %563 = arith.divf %561, %562 : vector<8x32xf32>
    %564 = arith.mulf %555, %529 : vector<8x32xf32>
    %565 = arith.mulf %549, %557 : vector<8x32xf32>
    %566 = arith.addf %564, %565 : vector<8x32xf32>
    %567 = math.tanh %566 : vector<8x32xf32>
    %568 = arith.mulf %563, %567 : vector<8x32xf32>
    %c0_84 = arith.constant 0 : index
    %c0_85 = arith.constant 0 : index
    %569 = vector.load %arg5[%c0_84, %c0_85] : memref<1x32xf32, #tpu.memory_space<vmem>>, vector<1x32xf32>
    %570 = vector.broadcast %569 : vector<1x32xf32> to vector<8x32xf32>
    %571 = arith.mulf %568, %570 : vector<8x32xf32>
    %cst_86 = arith.constant dense<0.000000e+00> : vector<8xf32>
    %572 = vector.multi_reduction <add>, %571, %cst_86 [1] : vector<8x32xf32> to vector<8xf32>
    %573 = vector.shape_cast %572 : vector<8xf32> to vector<8x1xf32>
    %c0_87 = arith.constant 0 : index
    %c0_88 = arith.constant 0 : index
    %574 = memref.load %arg6[%c0_87, %c0_88] : memref<1x1xf32, #tpu.memory_space<smem>>
    %575 = vector.broadcast %574 : f32 to vector<8x1xf32>
    %576 = arith.addf %573, %575 : vector<8x1xf32>
    %c0_89 = arith.constant 0 : index
    %c0_90 = arith.constant 0 : index
    %577 = vector.load %arg7[%c0_89, %c0_90] : memref<8x1xf32, #tpu.memory_space<vmem>>, vector<8x1xf32>
    tpu.vector_store %arg7[%c0_89, %c0_90], %576 {strides = array<i32>} : memref<8x1xf32, #tpu.memory_space<vmem>>, vector<8x1xf32>,
    return
  }
}

</mosaic_0001>

<llo_original>
// kernel: tpu_custom_call.1
$region0: #{tpu_custom_call.1}
  #allocation0 [shape = 'u32[]', space=smem, size = 0x4, offset = 0x4, fixed_abs, tag = 'smem constant byte address 0x4 - core index']
  #allocation1 [shape = 'u32[72,128]{1,0:T(1,128)}', space=vmem, size = 0x9000, scoped, tag = 'internal scratch']
  #allocation2 [shape = 'f32[1,1]{1,0:T(1,128)S(6)}', space=smem, size = 0x200, scoped, tag = 'scoped memory for tpu_custom_call.1']
  %s0 = inlined_call_operand.hbm [shape: f32[8,8], index: 0, kind: input, shape index: {}]
  %s1 = inlined_call_operand.vmem [shape: f32[1,128], index: 1, kind: input, shape index: {}]
  %s2 = inlined_call_operand.hbm [shape: bf16[1,32,128], index: 2, kind: input, shape index: {}]
  %s3 = inlined_call_operand.hbm [shape: bf16[2,32,128], index: 3, kind: input, shape index: {}]
  %s4 = inlined_call_operand.vmem [shape: f32[2,1,128], index: 4, kind: input, shape index: {}]
  %s5 = inlined_call_operand.vmem [shape: f32[1,32], index: 5, kind: input, shape index: {}]
  %s6 = inlined_call_operand.<no memory space> [shape: f32[1,1], index: 6, kind: input, shape index: {}]
  %s7 = inlined_call_operand.vmem [shape: f32[8,1], index: 7, kind: output, shape index: {}]
  %s8 = sld [smem:[#allocation0]]
  $region50: #{tpu_custom_call.1} parent=0
    _
  %s10 = ssub.s32 1, %s8
  %s11 = scalar_select 0, %s10, %s8
  %12 = sst [smem:[#allocation2]] %s6
  $region1: #{tpu_custom_call.1} parent=0
    #allocation3 [shape = 'u8[4096]{0}', space=vmem, size = 0x1000, scoped, tag = 'input window, operand 0, single buffered']
    #allocation4 [shape = 's32[1]{0}', space=sflag, size = 0x4, scoped, tag = 'scoped memory for tpu_custom_call.1']
    #allocation5 [shape = 'u8[8192]{0}', space=vmem, size = 0x2000, scoped, tag = 'input window, operand 2, single buffered']
    #allocation6 [shape = 's32[1]{0}', space=sflag, size = 0x4, scoped, tag = 'scoped memory for tpu_custom_call.1']
    #allocation7 [shape = 'u8[16384]{0}', space=vmem, size = 0x4000, scoped, tag = 'input window, operand 3, single buffered']
    %13 = vsyncpa [#allocation4], 0
    %14 = vsyncpa [#allocation6], 0
    // Predicated region
    $region2: #{tpu_custom_call.1} parent=1 // pred_check
      _
    $region3: #{tpu_custom_call.1} parent=1 // pred_check_branch
      %16 = sbr.rel (0) target = $region5
    $region4: #{tpu_custom_call.1} parent=1 // pred_region
      %18 = vsyncadd [#allocation4], 0
      %s20 = sshll.u32 %s0, 4
      %s21 = int_to_ptr.hbm [resolvable:$true] %s20
      %s22 = sshll.u32 [#allocation3], 4
      %s23 = int_to_ptr.vmem [resolvable:$true] %s22
      %25 = dma.hbm_to_vmem [thread:$0]  %s21, 128, %s23, [#allocation4]
    $region5: #{tpu_custom_call.1} parent=1 // pred_fallthru
      _
    // Predicated region
    $region6: #{tpu_custom_call.1} parent=1 // pred_check
      _
    $region7: #{tpu_custom_call.1} parent=1 // pred_check_branch
      %27 = sbr.rel (0) target = $region9
    $region8: #{tpu_custom_call.1} parent=1 // pred_region
      _
    $region9: #{tpu_custom_call.1} parent=1 // pred_fallthru
      _
    // Predicated region
    $region10: #{tpu_custom_call.1} parent=1 // pred_check
      _
    $region11: #{tpu_custom_call.1} parent=1 // pred_check_branch
      %29 = sbr.rel (0) target = $region13
    $region12: #{tpu_custom_call.1} parent=1 // pred_region
      %31 = vsyncadd [#allocation6], 0
      %s32 = sshll.u32 %s2, 4
      %s33 = int_to_ptr.hbm [resolvable:$true] %s32
      %s34 = sshll.u32 [#allocation5], 4
      %s35 = int_to_ptr.vmem [resolvable:$true] %s34
      %40 = dma.hbm_to_vmem [thread:$0]  %s33, 256, %s35, [#allocation6], 64, 64, 4
    $region13: #{tpu_custom_call.1} parent=1 // pred_fallthru
      _
    // Predicated region
    $region14: #{tpu_custom_call.1} parent=1 // pred_check
      _
    $region15: #{tpu_custom_call.1} parent=1 // pred_check_branch
      %42 = sbr.rel (0) target = $region17
    $region16: #{tpu_custom_call.1} parent=1 // pred_region
      %44 = vsyncadd [#allocation6], 0
      %s45 = sshll.u32 %s3, 4
      %s46 = int_to_ptr.hbm [resolvable:$true] %s45
      %s47 = sshll.u32 [#allocation7], 4
      %s48 = int_to_ptr.vmem [resolvable:$true] %s47
      %53 = dma.hbm_to_vmem [thread:$0]  %s46, 512, %s48, [#allocation6], 64, 64, 4
    $region17: #{tpu_custom_call.1} parent=1 // pred_fallthru
      _
    // Predicated region
    $region18: #{tpu_custom_call.1} parent=1 // pred_check
      _
    $region19: #{tpu_custom_call.1} parent=1 // pred_check_branch
      %55 = sbr.rel (0) target = $region21
    $region20: #{tpu_custom_call.1} parent=1 // pred_region
      _
    $region21: #{tpu_custom_call.1} parent=1 // pred_fallthru
      _
    // Predicated region
    $region22: #{tpu_custom_call.1} parent=1 // pred_check
      _
    $region23: #{tpu_custom_call.1} parent=1 // pred_check_branch
      %57 = sbr.rel (0) target = $region25
    $region24: #{tpu_custom_call.1} parent=1 // pred_region
      _
    $region25: #{tpu_custom_call.1} parent=1 // pred_fallthru
      _
    // Predicated region
    $region26: #{tpu_custom_call.1} parent=1 // pred_check
      _
    $region27: #{tpu_custom_call.1} parent=1 // pred_check_branch
      %59 = sbr.rel (0) target = $region29
    $region28: #{tpu_custom_call.1} parent=1 // pred_region
      _
    $region29: #{tpu_custom_call.1} parent=1 // pred_fallthru
      _
    // Predicated region
    $region30: #{tpu_custom_call.1} parent=1 // pred_check
      _
    $region31: #{tpu_custom_call.1} parent=1 // pred_check_branch
      %61 = sbr.rel (0) target = $region33
    $region32: #{tpu_custom_call.1} parent=1 // pred_region
      %63 = dma.done [#allocation4], 128
    $region33: #{tpu_custom_call.1} parent=1 // pred_fallthru
      _
    // Predicated region
    $region34: #{tpu_custom_call.1} parent=1 // pred_check
      _
    $region35: #{tpu_custom_call.1} parent=1 // pred_check_branch
      %65 = sbr.rel (0) target = $region37
    $region36: #{tpu_custom_call.1} parent=1 // pred_region
      %67 = dma.done [#allocation6], 256
    $region37: #{tpu_custom_call.1} parent=1 // pred_fallthru
      _
    // Predicated region
    $region38: #{tpu_custom_call.1} parent=1 // pred_check
      _
    $region39: #{tpu_custom_call.1} parent=1 // pred_check_branch
      %69 = sbr.rel (0) target = $region41
    $region40: #{tpu_custom_call.1} parent=1 // pred_region
      %71 = dma.done [#allocation6], 512
    $region41: #{tpu_custom_call.1} parent=1 // pred_fallthru
      _
    %v73 = vld [vmem:[#allocation3] sm:$0xff]
    %v74 = vld [vmem:[%s1] sm:$0x1]
    %v75 = vld [vmem:[#allocation5] sm:$0xf]
    %v76 = vld [vmem:[#allocation5 + $0x4] sm:$0xf]
    %v77 = vld [vmem:[#allocation5 + $0x8] sm:$0xf]
    %v78 = vld [vmem:[#allocation5 + $0xc] sm:$0xf]
    %v79 = vld [vmem:[#allocation7] sm:$0xf]
    %v80 = vld [vmem:[#allocation7 + $0x4] sm:$0xf]
    %v81 = vld [vmem:[#allocation7 + $0x8] sm:$0xf]
    %v82 = vld [vmem:[#allocation7 + $0xc] sm:$0xf]
    %v83 = vld [vmem:[#allocation7 + $0x10] sm:$0xf]
    %v84 = vld [vmem:[#allocation7 + $0x14] sm:$0xf]
    %v85 = vld [vmem:[#allocation7 + $0x18] sm:$0xf]
    %v86 = vld [vmem:[#allocation7 + $0x1c] sm:$0xf]
    %v87 = vld [vmem:[%s4] sm:$0x1]
    %v88 = vld [vmem:[%s4 + $0x1] sm:$0x1]
    %89 = vxpose.xlu0.b32.start [1/16] %v73, 128
    %90 = vxpose.xlu0.b32.cont [2/16] 0.0, 128
    %91 = vxpose.xlu0.b32.cont [3/16] 0.0, 128
    %92 = vxpose.xlu0.b32.cont [4/16] 0.0, 128
    %93 = vxpose.xlu0.b32.cont [5/16] 0.0, 128
    %94 = vxpose.xlu0.b32.cont [6/16] 0.0, 128
    %95 = vxpose.xlu0.b32.cont [7/16] 0.0, 128
    %96 = vxpose.xlu0.b32.cont [8/16] 0.0, 128
    %97 = vxpose.xlu0.b32.cont [9/16] 0.0, 128
    %98 = vxpose.xlu0.b32.cont [10/16] 0.0, 128
    %99 = vxpose.xlu0.b32.cont [11/16] 0.0, 128
    %100 = vxpose.xlu0.b32.cont [12/16] 0.0, 128
    %101 = vxpose.xlu0.b32.cont [13/16] 0.0, 128
    %102 = vxpose.xlu0.b32.cont [14/16] 0.0, 128
    %103 = vxpose.xlu0.b32.cont [15/16] 0.0, 128
    %104 = vxpose.xlu0.b32.end [16/16] 0.0, 128
    %v105 = vpop.trf.xlu0
    %v106 = vpop.trf.xlu0
    %v107 = vpop.trf.xlu0
    %v108 = vpop.trf.xlu0
    %v109 = vpop.trf.xlu0
    %v110 = vpop.trf.xlu0
    %v111 = vpop.trf.xlu0
    %v112 = vpop.trf.xlu0
    %v113 = vpop.trf.xlu0
    %v114 = vpop.trf.xlu0
    %v115 = vpop.trf.xlu0
    %v116 = vpop.trf.xlu0
    %v117 = vpop.trf.xlu0
    %v118 = vpop.trf.xlu0
    %v119 = vpop.trf.xlu0
    %v120 = vpop.trf.xlu0
    %v121 = vperm.slane %v105, 0
    %v122 = vlaneseq
    %v123 = vshrl.u32 %v122, 7
    %125 = vset.pattern.permute.xlu0 %v123
    %126 = vperm.xlu0 %125, %v121
    %v127 = vpop.permute.xlu0 %126
    %v128 = vperm.slane %v105, 1
    %v129 = vlaneseq
    %v130 = vshrl.u32 %v129, 7
    %132 = vset.pattern.permute.xlu0 %v130
    %133 = vperm.xlu0 %132, %v128
    %v134 = vpop.permute.xlu0 %133
    %v135 = vperm.slane %v105, 2
    %v136 = vlaneseq
    %v137 = vshrl.u32 %v136, 7
    %139 = vset.pattern.permute.xlu0 %v137
    %140 = vperm.xlu0 %139, %v135
    %v141 = vpop.permute.xlu0 %140
    %v142 = vperm.slane %v105, 3
    %v143 = vlaneseq
    %v144 = vshrl.u32 %v143, 7
    %146 = vset.pattern.permute.xlu0 %v144
    %147 = vperm.xlu0 %146, %v142
    %v148 = vpop.permute.xlu0 %147
    %v149 = vperm.slane %v105, 4
    %v150 = vlaneseq
    %v151 = vshrl.u32 %v150, 7
    %153 = vset.pattern.permute.xlu0 %v151
    %154 = vperm.xlu0 %153, %v149
    %v155 = vpop.permute.xlu0 %154
    %v156 = vperm.slane %v105, 5
    %v157 = vlaneseq
    %v158 = vshrl.u32 %v157, 7
    %160 = vset.pattern.permute.xlu0 %v158
    %161 = vperm.xlu0 %160, %v156
    %v162 = vpop.permute.xlu0 %161
    %v163 = vperm.slane %v105, 6
    %v164 = vlaneseq
    %v165 = vshrl.u32 %v164, 7
    %167 = vset.pattern.permute.xlu0 %v165
    %168 = vperm.xlu0 %167, %v163
    %v169 = vpop.permute.xlu0 %168
    %v170 = vperm.slane %v105, 7
    %v171 = vlaneseq
    %v172 = vshrl.u32 %v171, 7
    %174 = vset.pattern.permute.xlu0 %v172
    %175 = vperm.xlu0 %174, %v170
    %v176 = vpop.permute.xlu0 %175
    %v178 = vperm.slane %v74, 0
    %v180 = vmul.f32 %v127, %v178
    %v181 = vmul.f32 %v134, %v178
    %v182 = vmul.f32 %v141, %v178
    %v183 = vmul.f32 %v148, %v178
    %v184 = vmul.f32 %v155, %v178
    %v185 = vmul.f32 %v162, %v178
    %v186 = vmul.f32 %v169, %v178
    %v187 = vmul.f32 %v176, %v178
    %v189 = vperm.slane %v87, 0
    %v191 = vadd.f32 %v180, %v189
    %v192 = vadd.f32 %v181, %v189
    %v193 = vadd.f32 %v182, %v189
    %v194 = vadd.f32 %v183, %v189
    %v195 = vadd.f32 %v184, %v189
    %v196 = vadd.f32 %v185, %v189
    %v197 = vadd.f32 %v186, %v189
    %v198 = vadd.f32 %v187, %v189
    %v203 = vunpack.c.l.b16 %v79
    %v204 = vunpack.c.l.b16 %v80
    %v205 = vunpack.c.l.b16 %v81
    %v206 = vunpack.c.l.b16 %v82
    %v207 = vpack.c.b16 %v204, %v203
    %v208 = vpack.c.b16 %v206, %v205
    %vm211 = vcmask 261120
    %v213 = vsel %vm211, 0, 0
    %215 = vmatpush.bf16.msra.mxu0 0
    %216 = vmatpush.bf16.msra.mxu0 0
    %217 = vmatpush.bf16.msra.mxu0 0
    %218 = vmatpush.bf16.msra.mxu0 0
    %219 = vmatpush.bf16.msra.mxu0 0
    %220 = vmatpush.bf16.msra.mxu0 0
    %221 = vmatpush.bf16.msra.mxu0 %v208
    %222 = vmatpush.bf16.msra.mxu0 %v207
    %223 = vmatmul.bf16.gmra.mxu0 %v213
    %v224 = vpop.f32.mrf.mxu0
    %v225 = vadd.f32 0.0, %v224
    %v226 = vpop.f32.mrf.mxu0
    %227 = vdwg.mxu0
    %v228 = vadd.f32 %v191, %v225
    %v229 = vxor.u32 %v228, 2147483648
    %v230 = vmul.f32 %v229, 1.442695
    %v231 = vpow.pop %v230
    %v232 = vadd.f32 %v231, 1.0
    %v233 = vrcp.pop %v232
    %v234 = vmul.f32 %v232, %v233
    %v235 = vsub.f32 1.0, %v234
    %v236 = vmul.f32 %v233, %v235
    %v237 = vadd.f32 %v233, %v236
    %vm238 = vweird.f32 %v232
    %vm239 = vweird.f32 %v233
    %vm240 = vmor %vm238, %vm239
    %v241 = vsel %vm240, %v233, %v237
    %v242 = vand.u32 2147483647, %v232
    %vm243 = vcmp.eq.f32.partialorder %v242, 8.507059e+37
    %v244 = vand.u32 %v232, 2147483648
    %v245 = vor.u32 1.1754944e-38, %v244
    %v246 = vsel %vm243, %v245, %v241
    %v247 = vmul.f32 1.0, %v246
    %v248 = vtanh.pop %v228
    %v249 = vmul.f32 %v247, 0.0
    %251 = vrot.lane.b32.xlu0 %v248, 64
    %v252 = vpop.permute.xlu0 %251
    %v254 = vmul.f32 %v247, %v252
    %256 = vrot.lane.b32.xlu0 %v254, 32
    %v257 = vpop.permute.xlu0 %256
    %v259 = vadd.f32 %v249, %v257
    %v260 = vtanh.pop %v259
    %262 = vrot.lane.b32.xlu0 %v260, 64
    %v263 = vpop.permute.xlu0 %262
    %v265 = vmul.f32 %v247, %v263
    %v266 = vpack.c.bf16 %v265, %v265
    %268 = vrot.lane.b32.xlu0 %v266, 32
    %v269 = vpop.permute.xlu0 %268
    %v271 = vsel %vm211, %v269, 0
    %273 = vmatpush.bf16.msra.mxu0 0
    %274 = vmatpush.bf16.msra.mxu0 0
    %275 = vmatpush.bf16.msra.mxu0 0
    %276 = vmatpush.bf16.msra.mxu0 0
    %277 = vmatpush.bf16.msra.mxu0 0
    %278 = vmatpush.bf16.msra.mxu0 0
    %279 = vmatpush.bf16.msra.mxu0 %v208
    %280 = vmatpush.bf16.msra.mxu0 %v207
    %281 = vmatmul.bf16.gmra.mxu0 %v271
    %v282 = vpop.f32.mrf.mxu0
    %v283 = vadd.f32 0.0, %v282
    %v284 = vpop.f32.mrf.mxu0
    %285 = vdwg.mxu0
    %v286 = vadd.f32 %v192, %v283
    %v287 = vxor.u32 %v286, 2147483648
    %v288 = vmul.f32 %v287, 1.442695
    %v289 = vpow.pop %v288
    %v290 = vadd.f32 %v289, 1.0
    %v291 = vrcp.pop %v290
    %v292 = vmul.f32 %v290, %v291
    %v293 = vsub.f32 1.0, %v292
    %v294 = vmul.f32 %v291, %v293
    %v295 = vadd.f32 %v291, %v294
    %vm296 = vweird.f32 %v290
    %vm297 = vweird.f32 %v291
    %vm298 = vmor %vm296, %vm297
    %v299 = vsel %vm298, %v291, %v295
    %v300 = vand.u32 2147483647, %v290
    %vm301 = vcmp.eq.f32.partialorder %v300, 8.507059e+37
    %v302 = vand.u32 %v290, 2147483648
    %v303 = vor.u32 1.1754944e-38, %v302
    %v304 = vsel %vm301, %v303, %v299
    %v305 = vmul.f32 1.0, %v304
    %v306 = vtanh.pop %v286
    %v307 = vmul.f32 %v305, %v259
    %309 = vrot.lane.b32.xlu0 %v306, 64
    %v310 = vpop.permute.xlu0 %309
    %v312 = vmul.f32 %v305, %v310
    %314 = vrot.lane.b32.xlu0 %v312, 32
    %v315 = vpop.permute.xlu0 %314
    %v317 = vadd.f32 %v307, %v315
    %v318 = vtanh.pop %v317
    %320 = vrot.lane.b32.xlu0 %v318, 64
    %v321 = vpop.permute.xlu0 %320
    %v323 = vmul.f32 %v305, %v321
    %v325 = vperm.slane %v88, 0
    %v331 = vunpack.c.l.b16 %v75
    %v332 = vunpack.c.l.b16 %v76
    %v333 = vunpack.c.l.b16 %v77
    %v334 = vunpack.c.l.b16 %v78
    %v335 = vpack.c.b16 %v332, %v331
    %v336 = vpack.c.b16 %v334, %v333
    %339 = vmatpush.bf16.msra.mxu0 0
    %340 = vmatpush.bf16.msra.mxu0 0
    %341 = vmatpush.bf16.msra.mxu0 0
    %342 = vmatpush.bf16.msra.mxu0 0
    %343 = vmatpush.bf16.msra.mxu0 0
    %344 = vmatpush.bf16.msra.mxu0 0
    %345 = vmatpush.bf16.msra.mxu0 %v336
    %346 = vmatpush.bf16.msra.mxu0 %v335
    %347 = vmatmul.bf16.gmra.mxu0 %v271
    %v348 = vpop.f32.mrf.mxu0
    %v349 = vadd.f32 %v325, %v348
    %v350 = vpop.f32.mrf.mxu0
    %351 = vdwg.mxu0
    %v356 = vunpack.c.l.b16 %v83
    %v357 = vunpack.c.l.b16 %v84
    %v358 = vunpack.c.l.b16 %v85
    %v359 = vunpack.c.l.b16 %v86
    %v360 = vpack.c.b16 %v357, %v356
    %v361 = vpack.c.b16 %v359, %v358
    %364 = vmatpush.bf16.msra.mxu0 0
    %365 = vmatpush.bf16.msra.mxu0 0
    %366 = vmatpush.bf16.msra.mxu0 0
    %367 = vmatpush.bf16.msra.mxu0 0
    %368 = vmatpush.bf16.msra.mxu0 0
    %369 = vmatpush.bf16.msra.mxu0 0
    %370 = vmatpush.bf16.msra.mxu0 %v361
    %371 = vmatpush.bf16.msra.mxu0 %v360
    %372 = vmatmul.bf16.gmra.mxu0 %v213
    %v373 = vpop.f32.mrf.mxu0
    %v374 = vadd.f32 0.0, %v373
    %v375 = vpop.f32.mrf.mxu0
    %376 = vdwg.mxu0
    %v377 = vadd.f32 %v349, %v374
    %v378 = vxor.u32 %v377, 2147483648
    %v379 = vmul.f32 %v378, 1.442695
    %v380 = vpow.pop %v379
    %v381 = vadd.f32 %v380, 1.0
    %v382 = vrcp.pop %v381
    %v383 = vmul.f32 %v381, %v382
    %v384 = vsub.f32 1.0, %v383
    %v385 = vmul.f32 %v382, %v384
    %v386 = vadd.f32 %v382, %v385
    %vm387 = vweird.f32 %v381
    %vm388 = vweird.f32 %v382
    %vm389 = vmor %vm387, %vm388
    %v390 = vsel %vm389, %v382, %v386
    %v391 = vand.u32 2147483647, %v381
    %vm392 = vcmp.eq.f32.partialorder %v391, 8.507059e+37
    %v393 = vand.u32 %v381, 2147483648
    %v394 = vor.u32 1.1754944e-38, %v393
    %v395 = vsel %vm392, %v394, %v390
    %v396 = vmul.f32 1.0, %v395
    %v397 = vtanh.pop %v377
    %v398 = vmul.f32 %v396, 0.0
    %400 = vrot.lane.b32.xlu0 %v397, 64
    %v401 = vpop.permute.xlu0 %400
    %v403 = vmul.f32 %v396, %v401
    %405 = vrot.lane.b32.xlu0 %v403, 32
    %v406 = vpop.permute.xlu0 %405
    %v408 = vadd.f32 %v398, %v406
    %v409 = vtanh.pop %v408
    %411 = vrot.lane.b32.xlu0 %v409, 64
    %v412 = vpop.permute.xlu0 %411
    %v414 = vmul.f32 %v396, %v412
    %v415 = vpack.c.bf16 %v323, %v323
    %417 = vrot.lane.b32.xlu0 %v415, 32
    %v418 = vpop.permute.xlu0 %417
    %v420 = vsel %vm211, %v418, 0
    %422 = vmatpush.bf16.msra.mxu0 0
    %423 = vmatpush.bf16.msra.mxu0 0
    %424 = vmatpush.bf16.msra.mxu0 0
    %425 = vmatpush.bf16.msra.mxu0 0
    %426 = vmatpush.bf16.msra.mxu0 0
    %427 = vmatpush.bf16.msra.mxu0 0
    %428 = vmatpush.bf16.msra.mxu0 %v208
    %429 = vmatpush.bf16.msra.mxu0 %v207
    %430 = vmatmul.bf16.gmra.mxu0 %v420
    %v431 = vpop.f32.mrf.mxu0
    %v432 = vadd.f32 0.0, %v431
    %v433 = vpop.f32.mrf.mxu0
    %434 = vdwg.mxu0
    %v435 = vadd.f32 %v193, %v432
    %v436 = vxor.u32 %v435, 2147483648
    %v437 = vmul.f32 %v436, 1.442695
    %v438 = vpow.pop %v437
    %v439 = vadd.f32 %v438, 1.0
    %v440 = vrcp.pop %v439
    %v441 = vmul.f32 %v439, %v440
    %v442 = vsub.f32 1.0, %v441
    %v443 = vmul.f32 %v440, %v442
    %v444 = vadd.f32 %v440, %v443
    %vm445 = vweird.f32 %v439
    %vm446 = vweird.f32 %v440
    %vm447 = vmor %vm445, %vm446
    %v448 = vsel %vm447, %v440, %v444
    %v449 = vand.u32 2147483647, %v439
    %vm450 = vcmp.eq.f32.partialorder %v449, 8.507059e+37
    %v451 = vand.u32 %v439, 2147483648
    %v452 = vor.u32 1.1754944e-38, %v451
    %v453 = vsel %vm450, %v452, %v448
    %v454 = vmul.f32 1.0, %v453
    %v455 = vtanh.pop %v435
    %v456 = vmul.f32 %v454, %v317
    %458 = vrot.lane.b32.xlu0 %v455, 64
    %v459 = vpop.permute.xlu0 %458
    %v461 = vmul.f32 %v454, %v459
    %463 = vrot.lane.b32.xlu0 %v461, 32
    %v464 = vpop.permute.xlu0 %463
    %v466 = vadd.f32 %v456, %v464
    %v467 = vtanh.pop %v466
    %469 = vrot.lane.b32.xlu0 %v467, 64
    %v470 = vpop.permute.xlu0 %469
    %v472 = vmul.f32 %v454, %v470
    %473 = vmatpush.bf16.msra.mxu0 0
    %474 = vmatpush.bf16.msra.mxu0 0
    %475 = vmatpush.bf16.msra.mxu0 0
    %476 = vmatpush.bf16.msra.mxu0 0
    %477 = vmatpush.bf16.msra.mxu0 0
    %478 = vmatpush.bf16.msra.mxu0 0
    %479 = vmatpush.bf16.msra.mxu0 %v336
    %480 = vmatpush.bf16.msra.mxu0 %v335
    %481 = vmatmul.bf16.gmra.mxu0 %v420
    %v482 = vpop.f32.mrf.mxu0
    %v483 = vadd.f32 %v325, %v482
    %v484 = vpop.f32.mrf.mxu0
    %485 = vdwg.mxu0
    %v486 = vpack.c.bf16 %v414, %v414
    %488 = vrot.lane.b32.xlu0 %v486, 32
    %v489 = vpop.permute.xlu0 %488
    %v491 = vsel %vm211, %v489, 0
    %493 = vmatpush.bf16.msra.mxu0 0
    %494 = vmatpush.bf16.msra.mxu0 0
    %495 = vmatpush.bf16.msra.mxu0 0
    %496 = vmatpush.bf16.msra.mxu0 0
    %497 = vmatpush.bf16.msra.mxu0 0
    %498 = vmatpush.bf16.msra.mxu0 0
    %499 = vmatpush.bf16.msra.mxu0 %v361
    %500 = vmatpush.bf16.msra.mxu0 %v360
    %501 = vmatmul.bf16.gmra.mxu0 %v491
    %v502 = vpop.f32.mrf.mxu0
    %v503 = vadd.f32 0.0, %v502
    %v504 = vpop.f32.mrf.mxu0
    %505 = vdwg.mxu0
    %v506 = vadd.f32 %v483, %v503
    %v507 = vxor.u32 %v506, 2147483648
    %v508 = vmul.f32 %v507, 1.442695
    %v509 = vpow.pop %v508
    %v510 = vadd.f32 %v509, 1.0
    %v511 = vrcp.pop %v510
    %v512 = vmul.f32 %v510, %v511
    %v513 = vsub.f32 1.0, %v512
    %v514 = vmul.f32 %v511, %v513
    %v515 = vadd.f32 %v511, %v514
    %vm516 = vweird.f32 %v510
    %vm517 = vweird.f32 %v511
    %vm518 = vmor %vm516, %vm517
    %v519 = vsel %vm518, %v511, %v515
    %v520 = vand.u32 2147483647, %v510
    %vm521 = vcmp.eq.f32.partialorder %v520, 8.507059e+37
    %v522 = vand.u32 %v510, 2147483648
    %v523 = vor.u32 1.1754944e-38, %v522
    %v524 = vsel %vm521, %v523, %v519
    %v525 = vmul.f32 1.0, %v524
    %v526 = vtanh.pop %v506
    %v527 = vmul.f32 %v525, %v408
    %529 = vrot.lane.b32.xlu0 %v526, 64
    %v530 = vpop.permute.xlu0 %529
    %v532 = vmul.f32 %v525, %v530
    %534 = vrot.lane.b32.xlu0 %v532, 32
    %v535 = vpop.permute.xlu0 %534
    %v537 = vadd.f32 %v527, %v535
    %v538 = vtanh.pop %v537
    %540 = vrot.lane.b32.xlu0 %v538, 64
    %v541 = vpop.permute.xlu0 %540
    %v543 = vmul.f32 %v525, %v541
    %v544 = vpack.c.bf16 %v472, %v472
    %546 = vrot.lane.b32.xlu0 %v544, 32
    %v547 = vpop.permute.xlu0 %546
    %v549 = vsel %vm211, %v547, 0
    %551 = vmatpush.bf16.msra.mxu0 0
    %552 = vmatpush.bf16.msra.mxu0 0
    %553 = vmatpush.bf16.msra.mxu0 0
    %554 = vmatpush.bf16.msra.mxu0 0
    %555 = vmatpush.bf16.msra.mxu0 0
    %556 = vmatpush.bf16.msra.mxu0 0
    %557 = vmatpush.bf16.msra.mxu0 %v208
    %558 = vmatpush.bf16.msra.mxu0 %v207
    %559 = vmatmul.bf16.gmra.mxu0 %v549
    %v560 = vpop.f32.mrf.mxu0
    %v561 = vadd.f32 0.0, %v560
    %v562 = vpop.f32.mrf.mxu0
    %563 = vdwg.mxu0
    %v564 = vadd.f32 %v194, %v561
    %v565 = vxor.u32 %v564, 2147483648
    %v566 = vmul.f32 %v565, 1.442695
    %v567 = vpow.pop %v566
    %v568 = vadd.f32 %v567, 1.0
    %v569 = vrcp.pop %v568
    %v570 = vmul.f32 %v568, %v569
    %v571 = vsub.f32 1.0, %v570
    %v572 = vmul.f32 %v569, %v571
    %v573 = vadd.f32 %v569, %v572
    %vm574 = vweird.f32 %v568
    %vm575 = vweird.f32 %v569
    %vm576 = vmor %vm574, %vm575
    %v577 = vsel %vm576, %v569, %v573
    %v578 = vand.u32 2147483647, %v568
    %vm579 = vcmp.eq.f32.partialorder %v578, 8.507059e+37
    %v580 = vand.u32 %v568, 2147483648
    %v581 = vor.u32 1.1754944e-38, %v580
    %v582 = vsel %vm579, %v581, %v577
    %v583 = vmul.f32 1.0, %v582
    %v584 = vtanh.pop %v564
    %v585 = vmul.f32 %v583, %v466
    %587 = vrot.lane.b32.xlu0 %v584, 64
    %v588 = vpop.permute.xlu0 %587
    %v590 = vmul.f32 %v583, %v588
    %592 = vrot.lane.b32.xlu0 %v590, 32
    %v593 = vpop.permute.xlu0 %592
    %v595 = vadd.f32 %v585, %v593
    %v596 = vtanh.pop %v595
    %598 = vrot.lane.b32.xlu0 %v596, 64
    %v599 = vpop.permute.xlu0 %598
    %v601 = vmul.f32 %v583, %v599
    %602 = vmatpush.bf16.msra.mxu0 0
    %603 = vmatpush.bf16.msra.mxu0 0
    %604 = vmatpush.bf16.msra.mxu0 0
    %605 = vmatpush.bf16.msra.mxu0 0
    %606 = vmatpush.bf16.msra.mxu0 0
    %607 = vmatpush.bf16.msra.mxu0 0
    %608 = vmatpush.bf16.msra.mxu0 %v336
    %609 = vmatpush.bf16.msra.mxu0 %v335
    %610 = vmatmul.bf16.gmra.mxu0 %v549
    %v611 = vpop.f32.mrf.mxu0
    %v612 = vadd.f32 %v325, %v611
    %v613 = vpop.f32.mrf.mxu0
    %614 = vdwg.mxu0
    %v615 = vpack.c.bf16 %v543, %v543
    %617 = vrot.lane.b32.xlu0 %v615, 32
    %v618 = vpop.permute.xlu0 %617
    %v620 = vsel %vm211, %v618, 0
    %622 = vmatpush.bf16.msra.mxu0 0
    %623 = vmatpush.bf16.msra.mxu0 0
    %624 = vmatpush.bf16.msra.mxu0 0
    %625 = vmatpush.bf16.msra.mxu0 0
    %626 = vmatpush.bf16.msra.mxu0 0
    %627 = vmatpush.bf16.msra.mxu0 0
    %628 = vmatpush.bf16.msra.mxu0 %v361
    %629 = vmatpush.bf16.msra.mxu0 %v360
    %630 = vmatmul.bf16.gmra.mxu0 %v620
    %v631 = vpop.f32.mrf.mxu0
    %v632 = vadd.f32 0.0, %v631
    %v633 = vpop.f32.mrf.mxu0
    %634 = vdwg.mxu0
    %v635 = vadd.f32 %v612, %v632
    %v636 = vxor.u32 %v635, 2147483648
    %v637 = vmul.f32 %v636, 1.442695
    %v638 = vpow.pop %v637
    %v639 = vadd.f32 %v638, 1.0
    %v640 = vrcp.pop %v639
    %v641 = vmul.f32 %v639, %v640
    %v642 = vsub.f32 1.0, %v641
    %v643 = vmul.f32 %v640, %v642
    %v644 = vadd.f32 %v640, %v643
    %vm645 = vweird.f32 %v639
    %vm646 = vweird.f32 %v640
    %vm647 = vmor %vm645, %vm646
    %v648 = vsel %vm647, %v640, %v644
    %v649 = vand.u32 2147483647, %v639
    %vm650 = vcmp.eq.f32.partialorder %v649, 8.507059e+37
    %v651 = vand.u32 %v639, 2147483648
    %v652 = vor.u32 1.1754944e-38, %v651
    %v653 = vsel %vm650, %v652, %v648
    %v654 = vmul.f32 1.0, %v653
    %v655 = vtanh.pop %v635
    %v656 = vmul.f32 %v654, %v537
    %658 = vrot.lane.b32.xlu0 %v655, 64
    %v659 = vpop.permute.xlu0 %658
    %v661 = vmul.f32 %v654, %v659
    %663 = vrot.lane.b32.xlu0 %v661, 32
    %v664 = vpop.permute.xlu0 %663
    %v666 = vadd.f32 %v656, %v664
    %v667 = vtanh.pop %v666
    %669 = vrot.lane.b32.xlu0 %v667, 64
    %v670 = vpop.permute.xlu0 %669
    %v672 = vmul.f32 %v654, %v670
    %v673 = vpack.c.bf16 %v601, %v601
    %675 = vrot.lane.b32.xlu0 %v673, 32
    %v676 = vpop.permute.xlu0 %675
    %v678 = vsel %vm211, %v676, 0
    %680 = vmatpush.bf16.msra.mxu0 0
    %681 = vmatpush.bf16.msra.mxu0 0
    %682 = vmatpush.bf16.msra.mxu0 0
    %683 = vmatpush.bf16.msra.mxu0 0
    %684 = vmatpush.bf16.msra.mxu0 0
    %685 = vmatpush.bf16.msra.mxu0 0
    %686 = vmatpush.bf16.msra.mxu0 %v208
    %687 = vmatpush.bf16.msra.mxu0 %v207
    %688 = vmatmul.bf16.gmra.mxu0 %v678
    %v689 = vpop.f32.mrf.mxu0
    %v690 = vadd.f32 0.0, %v689
    %v691 = vpop.f32.mrf.mxu0
    %692 = vdwg.mxu0
    %v693 = vadd.f32 %v195, %v690
    %v694 = vxor.u32 %v693, 2147483648
    %v695 = vmul.f32 %v694, 1.442695
    %v696 = vpow.pop %v695
    %v697 = vadd.f32 %v696, 1.0
    %v698 = vrcp.pop %v697
    %v699 = vmul.f32 %v697, %v698
    %v700 = vsub.f32 1.0, %v699
    %v701 = vmul.f32 %v698, %v700
    %v702 = vadd.f32 %v698, %v701
    %vm703 = vweird.f32 %v697
    %vm704 = vweird.f32 %v698
    %vm705 = vmor %vm703, %vm704
    %v706 = vsel %vm705, %v698, %v702
    %v707 = vand.u32 2147483647, %v697
    %vm708 = vcmp.eq.f32.partialorder %v707, 8.507059e+37
    %v709 = vand.u32 %v697, 2147483648
    %v710 = vor.u32 1.1754944e-38, %v709
    %v711 = vsel %vm708, %v710, %v706
    %v712 = vmul.f32 1.0, %v711
    %v713 = vtanh.pop %v693
    %v714 = vmul.f32 %v712, %v595
    %716 = vrot.lane.b32.xlu0 %v713, 64
    %v717 = vpop.permute.xlu0 %716
    %v719 = vmul.f32 %v712, %v717
    %721 = vrot.lane.b32.xlu0 %v719, 32
    %v722 = vpop.permute.xlu0 %721
    %v724 = vadd.f32 %v714, %v722
    %v725 = vtanh.pop %v724
    %727 = vrot.lane.b32.xlu0 %v725, 64
    %v728 = vpop.permute.xlu0 %727
    %v730 = vmul.f32 %v712, %v728
    %731 = vmatpush.bf16.msra.mxu0 0
    %732 = vmatpush.bf16.msra.mxu0 0
    %733 = vmatpush.bf16.msra.mxu0 0
    %734 = vmatpush.bf16.msra.mxu0 0
    %735 = vmatpush.bf16.msra.mxu0 0
    %736 = vmatpush.bf16.msra.mxu0 0
    %737 = vmatpush.bf16.msra.mxu0 %v336
    %738 = vmatpush.bf16.msra.mxu0 %v335
    %739 = vmatmul.bf16.gmra.mxu0 %v678
    %v740 = vpop.f32.mrf.mxu0
    %v741 = vadd.f32 %v325, %v740
    %v742 = vpop.f32.mrf.mxu0
    %743 = vdwg.mxu0
    %v744 = vpack.c.bf16 %v672, %v672
    %746 = vrot.lane.b32.xlu0 %v744, 32
    %v747 = vpop.permute.xlu0 %746
    %v749 = vsel %vm211, %v747, 0
    %751 = vmatpush.bf16.msra.mxu0 0
    %752 = vmatpush.bf16.msra.mxu0 0
    %753 = vmatpush.bf16.msra.mxu0 0
    %754 = vmatpush.bf16.msra.mxu0 0
    %755 = vmatpush.bf16.msra.mxu0 0
    %756 = vmatpush.bf16.msra.mxu0 0
    %757 = vmatpush.bf16.msra.mxu0 %v361
    %758 = vmatpush.bf16.msra.mxu0 %v360
    %759 = vmatmul.bf16.gmra.mxu0 %v749
    %v760 = vpop.f32.mrf.mxu0
    %v761 = vadd.f32 0.0, %v760
    %v762 = vpop.f32.mrf.mxu0
    %763 = vdwg.mxu0
    %v764 = vadd.f32 %v741, %v761
    %v765 = vxor.u32 %v764, 2147483648
    %v766 = vmul.f32 %v765, 1.442695
    %v767 = vpow.pop %v766
    %v768 = vadd.f32 %v767, 1.0
    %v769 = vrcp.pop %v768
    %v770 = vmul.f32 %v768, %v769
    %v771 = vsub.f32 1.0, %v770
    %v772 = vmul.f32 %v769, %v771
    %v773 = vadd.f32 %v769, %v772
    %vm774 = vweird.f32 %v768
    %vm775 = vweird.f32 %v769
    %vm776 = vmor %vm774, %vm775
    %v777 = vsel %vm776, %v769, %v773
    %v778 = vand.u32 2147483647, %v768
    %vm779 = vcmp.eq.f32.partialorder %v778, 8.507059e+37
    %v780 = vand.u32 %v768, 2147483648
    %v781 = vor.u32 1.1754944e-38, %v780
    %v782 = vsel %vm779, %v781, %v777
    %v783 = vmul.f32 1.0, %v782
    %v784 = vtanh.pop %v764
    %v785 = vmul.f32 %v783, %v666
    %787 = vrot.lane.b32.xlu0 %v784, 64
    %v788 = vpop.permute.xlu0 %787
    %v790 = vmul.f32 %v783, %v788
    %792 = vrot.lane.b32.xlu0 %v790, 32
    %v793 = vpop.permute.xlu0 %792
    %v795 = vadd.f32 %v785, %v793
    %v796 = vtanh.pop %v795
    %798 = vrot.lane.b32.xlu0 %v796, 64
    %v799 = vpop.permute.xlu0 %798
    %v801 = vmul.f32 %v783, %v799
    %v802 = vpack.c.bf16 %v730, %v730
    %804 = vrot.lane.b32.xlu0 %v802, 32
    %v805 = vpop.permute.xlu0 %804
    %v807 = vsel %vm211, %v805, 0
    %809 = vmatpush.bf16.msra.mxu0 0
    %810 = vmatpush.bf16.msra.mxu0 0
    %811 = vmatpush.bf16.msra.mxu0 0
    %812 = vmatpush.bf16.msra.mxu0 0
    %813 = vmatpush.bf16.msra.mxu0 0
    %814 = vmatpush.bf16.msra.mxu0 0
    %815 = vmatpush.bf16.msra.mxu0 %v208
    %816 = vmatpush.bf16.msra.mxu0 %v207
    %817 = vmatmul.bf16.gmra.mxu0 %v807
    %v818 = vpop.f32.mrf.mxu0
    %v819 = vadd.f32 0.0, %v818
    %v820 = vpop.f32.mrf.mxu0
    %821 = vdwg.mxu0
    %v822 = vadd.f32 %v196, %v819
    %v823 = vxor.u32 %v822, 2147483648
    %v824 = vmul.f32 %v823, 1.442695
    %v825 = vpow.pop %v824
    %v826 = vadd.f32 %v825, 1.0
    %v827 = vrcp.pop %v826
    %v828 = vmul.f32 %v826, %v827
    %v829 = vsub.f32 1.0, %v828
    %v830 = vmul.f32 %v827, %v829
    %v831 = vadd.f32 %v827, %v830
    %vm832 = vweird.f32 %v826
    %vm833 = vweird.f32 %v827
    %vm834 = vmor %vm832, %vm833
    %v835 = vsel %vm834, %v827, %v831
    %v836 = vand.u32 2147483647, %v826
    %vm837 = vcmp.eq.f32.partialorder %v836, 8.507059e+37
    %v838 = vand.u32 %v826, 2147483648
    %v839 = vor.u32 1.1754944e-38, %v838
    %v840 = vsel %vm837, %v839, %v835
    %v841 = vmul.f32 1.0, %v840
    %v842 = vtanh.pop %v822
    %v843 = vmul.f32 %v841, %v724
    %845 = vrot.lane.b32.xlu0 %v842, 64
    %v846 = vpop.permute.xlu0 %845
    %v848 = vmul.f32 %v841, %v846
    %850 = vrot.lane.b32.xlu0 %v848, 32
    %v851 = vpop.permute.xlu0 %850
    %v853 = vadd.f32 %v843, %v851
    %v854 = vtanh.pop %v853
    %856 = vrot.lane.b32.xlu0 %v854, 64
    %v857 = vpop.permute.xlu0 %856
    %v859 = vmul.f32 %v841, %v857
    %860 = vmatpush.bf16.msra.mxu0 0
    %861 = vmatpush.bf16.msra.mxu0 0
    %862 = vmatpush.bf16.msra.mxu0 0
    %863 = vmatpush.bf16.msra.mxu0 0
    %864 = vmatpush.bf16.msra.mxu0 0
    %865 = vmatpush.bf16.msra.mxu0 0
    %866 = vmatpush.bf16.msra.mxu0 %v336
    %867 = vmatpush.bf16.msra.mxu0 %v335
    %868 = vmatmul.bf16.gmra.mxu0 %v807
    %v869 = vpop.f32.mrf.mxu0
    %v870 = vadd.f32 %v325, %v869
    %v871 = vpop.f32.mrf.mxu0
    %872 = vdwg.mxu0
    %v873 = vpack.c.bf16 %v801, %v801
    %875 = vrot.lane.b32.xlu0 %v873, 32
    %v876 = vpop.permute.xlu0 %875
    %v878 = vsel %vm211, %v876, 0
    %880 = vmatpush.bf16.msra.mxu0 0
    %881 = vmatpush.bf16.msra.mxu0 0
    %882 = vmatpush.bf16.msra.mxu0 0
    %883 = vmatpush.bf16.msra.mxu0 0
    %884 = vmatpush.bf16.msra.mxu0 0
    %885 = vmatpush.bf16.msra.mxu0 0
    %886 = vmatpush.bf16.msra.mxu0 %v361
    %887 = vmatpush.bf16.msra.mxu0 %v360
    %888 = vmatmul.bf16.gmra.mxu0 %v878
    %v889 = vpop.f32.mrf.mxu0
    %v890 = vadd.f32 0.0, %v889
    %v891 = vpop.f32.mrf.mxu0
    %892 = vdwg.mxu0
    %v893 = vadd.f32 %v870, %v890
    %v894 = vxor.u32 %v893, 2147483648
    %v895 = vmul.f32 %v894, 1.442695
    %v896 = vpow.pop %v895
    %v897 = vadd.f32 %v896, 1.0
    %v898 = vrcp.pop %v897
    %v899 = vmul.f32 %v897, %v898
    %v900 = vsub.f32 1.0, %v899
    %v901 = vmul.f32 %v898, %v900
    %v902 = vadd.f32 %v898, %v901
    %vm903 = vweird.f32 %v897
    %vm904 = vweird.f32 %v898
    %vm905 = vmor %vm903, %vm904
    %v906 = vsel %vm905, %v898, %v902
    %v907 = vand.u32 2147483647, %v897
    %vm908 = vcmp.eq.f32.partialorder %v907, 8.507059e+37
    %v909 = vand.u32 %v897, 2147483648
    %v910 = vor.u32 1.1754944e-38, %v909
    %v911 = vsel %vm908, %v910, %v906
    %v912 = vmul.f32 1.0, %v911
    %v913 = vtanh.pop %v893
    %v914 = vmul.f32 %v912, %v795
    %916 = vrot.lane.b32.xlu0 %v913, 64
    %v917 = vpop.permute.xlu0 %916
    %v919 = vmul.f32 %v912, %v917
    %921 = vrot.lane.b32.xlu0 %v919, 32
    %v922 = vpop.permute.xlu0 %921
    %v924 = vadd.f32 %v914, %v922
    %v925 = vtanh.pop %v924
    %927 = vrot.lane.b32.xlu0 %v925, 64
    %v928 = vpop.permute.xlu0 %927
    %v930 = vmul.f32 %v912, %v928
    %v931 = vpack.c.bf16 %v859, %v859
    %933 = vrot.lane.b32.xlu0 %v931, 32
    %v934 = vpop.permute.xlu0 %933
    %v936 = vsel %vm211, %v934, 0
    %938 = vmatpush.bf16.msra.mxu0 0
    %939 = vmatpush.bf16.msra.mxu0 0
    %940 = vmatpush.bf16.msra.mxu0 0
    %941 = vmatpush.bf16.msra.mxu0 0
    %942 = vmatpush.bf16.msra.mxu0 0
    %943 = vmatpush.bf16.msra.mxu0 0
    %944 = vmatpush.bf16.msra.mxu0 %v208
    %945 = vmatpush.bf16.msra.mxu0 %v207
    %946 = vmatmul.bf16.gmra.mxu0 %v936
    %v947 = vpop.f32.mrf.mxu0
    %v948 = vadd.f32 0.0, %v947
    %v949 = vpop.f32.mrf.mxu0
    %950 = vdwg.mxu0
    %v951 = vadd.f32 %v197, %v948
    %v952 = vxor.u32 %v951, 2147483648
    %v953 = vmul.f32 %v952, 1.442695
    %v954 = vpow.pop %v953
    %v955 = vadd.f32 %v954, 1.0
    %v956 = vrcp.pop %v955
    %v957 = vmul.f32 %v955, %v956
    %v958 = vsub.f32 1.0, %v957
    %v959 = vmul.f32 %v956, %v958
    %v960 = vadd.f32 %v956, %v959
    %vm961 = vweird.f32 %v955
    %vm962 = vweird.f32 %v956
    %vm963 = vmor %vm961, %vm962
    %v964 = vsel %vm963, %v956, %v960
    %v965 = vand.u32 2147483647, %v955
    %vm966 = vcmp.eq.f32.partialorder %v965, 8.507059e+37
    %v967 = vand.u32 %v955, 2147483648
    %v968 = vor.u32 1.1754944e-38, %v967
    %v969 = vsel %vm966, %v968, %v964
    %v970 = vmul.f32 1.0, %v969
    %v971 = vtanh.pop %v951
    %v972 = vmul.f32 %v970, %v853
    %974 = vrot.lane.b32.xlu0 %v971, 64
    %v975 = vpop.permute.xlu0 %974
    %v977 = vmul.f32 %v970, %v975
    %979 = vrot.lane.b32.xlu0 %v977, 32
    %v980 = vpop.permute.xlu0 %979
    %v982 = vadd.f32 %v972, %v980
    %v983 = vtanh.pop %v982
    %985 = vrot.lane.b32.xlu0 %v983, 64
    %v986 = vpop.permute.xlu0 %985
    %v988 = vmul.f32 %v970, %v986
    %989 = vmatpush.bf16.msra.mxu0 0
    %990 = vmatpush.bf16.msra.mxu0 0
    %991 = vmatpush.bf16.msra.mxu0 0
    %992 = vmatpush.bf16.msra.mxu0 0
    %993 = vmatpush.bf16.msra.mxu0 0
    %994 = vmatpush.bf16.msra.mxu0 0
    %995 = vmatpush.bf16.msra.mxu0 %v336
    %996 = vmatpush.bf16.msra.mxu0 %v335
    %997 = vmatmul.bf16.gmra.mxu0 %v936
    %v998 = vpop.f32.mrf.mxu0
    %v999 = vadd.f32 %v325, %v998
    %v1000 = vpop.f32.mrf.mxu0
    %1001 = vdwg.mxu0
    %v1002 = vpack.c.bf16 %v930, %v930
    %1004 = vrot.lane.b32.xlu0 %v1002, 32
    %v1005 = vpop.permute.xlu0 %1004
    %v1007 = vsel %vm211, %v1005, 0
    %1009 = vmatpush.bf16.msra.mxu0 0
    %1010 = vmatpush.bf16.msra.mxu0 0
    %1011 = vmatpush.bf16.msra.mxu0 0
    %1012 = vmatpush.bf16.msra.mxu0 0
    %1013 = vmatpush.bf16.msra.mxu0 0
    %1014 = vmatpush.bf16.msra.mxu0 0
    %1015 = vmatpush.bf16.msra.mxu0 %v361
    %1016 = vmatpush.bf16.msra.mxu0 %v360
    %1017 = vmatmul.bf16.gmra.mxu0 %v1007
    %v1018 = vpop.f32.mrf.mxu0
    %v1019 = vadd.f32 0.0, %v1018
    %v1020 = vpop.f32.mrf.mxu0
    %1021 = vdwg.mxu0
    %v1022 = vadd.f32 %v999, %v1019
    %v1023 = vxor.u32 %v1022, 2147483648
    %v1024 = vmul.f32 %v1023, 1.442695
    %v1025 = vpow.pop %v1024
    %v1026 = vadd.f32 %v1025, 1.0
    %v1027 = vrcp.pop %v1026
    %v1028 = vmul.f32 %v1026, %v1027
    %v1029 = vsub.f32 1.0, %v1028
    %v1030 = vmul.f32 %v1027, %v1029
    %v1031 = vadd.f32 %v1027, %v1030
    %vm1032 = vweird.f32 %v1026
    %vm1033 = vweird.f32 %v1027
    %vm1034 = vmor %vm1032, %vm1033
    %v1035 = vsel %vm1034, %v1027, %v1031
    %v1036 = vand.u32 2147483647, %v1026
    %vm1037 = vcmp.eq.f32.partialorder %v1036, 8.507059e+37
    %v1038 = vand.u32 %v1026, 2147483648
    %v1039 = vor.u32 1.1754944e-38, %v1038
    %v1040 = vsel %vm1037, %v1039, %v1035
    %v1041 = vmul.f32 1.0, %v1040
    %v1042 = vtanh.pop %v1022
    %v1043 = vmul.f32 %v1041, %v924
    %1045 = vrot.lane.b32.xlu0 %v1042, 64
    %v1046 = vpop.permute.xlu0 %1045
    %v1048 = vmul.f32 %v1041, %v1046
    %1050 = vrot.lane.b32.xlu0 %v1048, 32
    %v1051 = vpop.permute.xlu0 %1050
    %v1053 = vadd.f32 %v1043, %v1051
    %v1054 = vtanh.pop %v1053
    %1056 = vrot.lane.b32.xlu0 %v1054, 64
    %v1057 = vpop.permute.xlu0 %1056
    %v1059 = vmul.f32 %v1041, %v1057
    %v1060 = vpack.c.bf16 %v988, %v988
    %1062 = vrot.lane.b32.xlu0 %v1060, 32
    %v1063 = vpop.permute.xlu0 %1062
    %v1065 = vsel %vm211, %v1063, 0
    %1067 = vmatpush.bf16.msra.mxu0 0
    %1068 = vmatpush.bf16.msra.mxu0 0
    %1069 = vmatpush.bf16.msra.mxu0 0
    %1070 = vmatpush.bf16.msra.mxu0 0
    %1071 = vmatpush.bf16.msra.mxu0 0
    %1072 = vmatpush.bf16.msra.mxu0 0
    %1073 = vmatpush.bf16.msra.mxu0 %v208
    %1074 = vmatpush.bf16.msra.mxu0 %v207
    %1075 = vmatmul.bf16.gmra.mxu0 %v1065
    %v1076 = vpop.f32.mrf.mxu0
    %v1077 = vadd.f32 0.0, %v1076
    %v1078 = vpop.f32.mrf.mxu0
    %1079 = vdwg.mxu0
    %v1080 = vadd.f32 %v198, %v1077
    %v1081 = vxor.u32 %v1080, 2147483648
    %v1082 = vmul.f32 %v1081, 1.442695
    %v1083 = vpow.pop %v1082
    %v1084 = vadd.f32 %v1083, 1.0
    %v1085 = vrcp.pop %v1084
    %v1086 = vmul.f32 %v1084, %v1085
    %v1087 = vsub.f32 1.0, %v1086
    %v1088 = vmul.f32 %v1085, %v1087
    %v1089 = vadd.f32 %v1085, %v1088
    %vm1090 = vweird.f32 %v1084
    %vm1091 = vweird.f32 %v1085
    %vm1092 = vmor %vm1090, %vm1091
    %v1093 = vsel %vm1092, %v1085, %v1089
    %v1094 = vand.u32 2147483647, %v1084
    %vm1095 = vcmp.eq.f32.partialorder %v1094, 8.507059e+37
    %v1096 = vand.u32 %v1084, 2147483648
    %v1097 = vor.u32 1.1754944e-38, %v1096
    %v1098 = vsel %vm1095, %v1097, %v1093
    %v1099 = vmul.f32 1.0, %v1098
    %v1100 = vtanh.pop %v1080
    %v1101 = vmul.f32 %v1099, %v982
    %1103 = vrot.lane.b32.xlu0 %v1100, 64
    %v1104 = vpop.permute.xlu0 %1103
    %v1106 = vmul.f32 %v1099, %v1104
    %1108 = vrot.lane.b32.xlu0 %v1106, 32
    %v1109 = vpop.permute.xlu0 %1108
    %v1111 = vadd.f32 %v1101, %v1109
    %v1112 = vtanh.pop %v1111
    %1114 = vrot.lane.b32.xlu0 %v1112, 64
    %v1115 = vpop.permute.xlu0 %1114
    %v1117 = vmul.f32 %v1099, %v1115
    %1118 = vmatpush.bf16.msra.mxu0 0
    %1119 = vmatpush.bf16.msra.mxu0 0
    %1120 = vmatpush.bf16.msra.mxu0 0
    %1121 = vmatpush.bf16.msra.mxu0 0
    %1122 = vmatpush.bf16.msra.mxu0 0
    %1123 = vmatpush.bf16.msra.mxu0 0
    %1124 = vmatpush.bf16.msra.mxu0 %v336
    %1125 = vmatpush.bf16.msra.mxu0 %v335
    %1126 = vmatmul.bf16.gmra.mxu0 %v1065
    %v1127 = vpop.f32.mrf.mxu0
    %v1128 = vadd.f32 %v325, %v1127
    %v1129 = vpop.f32.mrf.mxu0
    %1130 = vdwg.mxu0
    %v1131 = vpack.c.bf16 %v1059, %v1059
    %1133 = vrot.lane.b32.xlu0 %v1131, 32
    %v1134 = vpop.permute.xlu0 %1133
    %v1136 = vsel %vm211, %v1134, 0
    %1138 = vmatpush.bf16.msra.mxu0 0
    %1139 = vmatpush.bf16.msra.mxu0 0
    %1140 = vmatpush.bf16.msra.mxu0 0
    %1141 = vmatpush.bf16.msra.mxu0 0
    %1142 = vmatpush.bf16.msra.mxu0 0
    %1143 = vmatpush.bf16.msra.mxu0 0
    %1144 = vmatpush.bf16.msra.mxu0 %v361
    %1145 = vmatpush.bf16.msra.mxu0 %v360
    %1146 = vmatmul.bf16.gmra.mxu0 %v1136
    %v1147 = vpop.f32.mrf.mxu0
    %v1148 = vadd.f32 0.0, %v1147
    %v1149 = vpop.f32.mrf.mxu0
    %1150 = vdwg.mxu0
    %v1151 = vadd.f32 %v1128, %v1148
    %v1152 = vxor.u32 %v1151, 2147483648
    %v1153 = vmul.f32 %v1152, 1.442695
    %v1154 = vpow.pop %v1153
    %v1155 = vadd.f32 %v1154, 1.0
    %v1156 = vrcp.pop %v1155
    %v1157 = vmul.f32 %v1155, %v1156
    %v1158 = vsub.f32 1.0, %v1157
    %v1159 = vmul.f32 %v1156, %v1158
    %v1160 = vadd.f32 %v1156, %v1159
    %vm1161 = vweird.f32 %v1155
    %vm1162 = vweird.f32 %v1156
    %vm1163 = vmor %vm1161, %vm1162
    %v1164 = vsel %vm1163, %v1156, %v1160
    %v1165 = vand.u32 2147483647, %v1155
    %vm1166 = vcmp.eq.f32.partialorder %v1165, 8.507059e+37
    %v1167 = vand.u32 %v1155, 2147483648
    %v1168 = vor.u32 1.1754944e-38, %v1167
    %v1169 = vsel %vm1166, %v1168, %v1164
    %v1170 = vmul.f32 1.0, %v1169
    %v1171 = vtanh.pop %v1151
    %v1172 = vmul.f32 %v1170, %v1053
    %1174 = vrot.lane.b32.xlu0 %v1171, 64
    %v1175 = vpop.permute.xlu0 %1174
    %v1177 = vmul.f32 %v1170, %v1175
    %1179 = vrot.lane.b32.xlu0 %v1177, 32
    %v1180 = vpop.permute.xlu0 %1179
    %v1182 = vadd.f32 %v1172, %v1180
    %v1183 = vtanh.pop %v1182
    %1185 = vrot.lane.b32.xlu0 %v1183, 64
    %v1186 = vpop.permute.xlu0 %1185
    %v1188 = vmul.f32 %v1170, %v1186
    %v1189 = vpack.c.bf16 %v1117, %v1117
    %1191 = vrot.lane.b32.xlu0 %v1189, 32
    %v1192 = vpop.permute.xlu0 %1191
    %v1194 = vsel %vm211, %v1192, 0
    %1196 = vmatpush.bf16.msra.mxu0 0
    %1197 = vmatpush.bf16.msra.mxu0 0
    %1198 = vmatpush.bf16.msra.mxu0 0
    %1199 = vmatpush.bf16.msra.mxu0 0
    %1200 = vmatpush.bf16.msra.mxu0 0
    %1201 = vmatpush.bf16.msra.mxu0 0
    %1202 = vmatpush.bf16.msra.mxu0 %v336
    %1203 = vmatpush.bf16.msra.mxu0 %v335
    %1204 = vmatmul.bf16.gmra.mxu0 %v1194
    %v1205 = vpop.f32.mrf.mxu0
    %v1206 = vadd.f32 %v325, %v1205
    %v1207 = vpop.f32.mrf.mxu0
    %1208 = vdwg.mxu0
    %v1209 = vpack.c.bf16 %v1188, %v1188
    %1211 = vrot.lane.b32.xlu0 %v1209, 32
    %v1212 = vpop.permute.xlu0 %1211
    %v1214 = vsel %vm211, %v1212, 0
    %1216 = vmatpush.bf16.msra.mxu0 0
    %1217 = vmatpush.bf16.msra.mxu0 0
    %1218 = vmatpush.bf16.msra.mxu0 0
    %1219 = vmatpush.bf16.msra.mxu0 0
    %1220 = vmatpush.bf16.msra.mxu0 0
    %1221 = vmatpush.bf16.msra.mxu0 0
    %1222 = vmatpush.bf16.msra.mxu0 %v361
    %1223 = vmatpush.bf16.msra.mxu0 %v360
    %1224 = vmatmul.bf16.gmra.mxu0 %v1214
    %v1225 = vpop.f32.mrf.mxu0
    %v1226 = vadd.f32 0.0, %v1225
    %v1227 = vpop.f32.mrf.mxu0
    %1228 = vdwg.mxu0
    %v1229 = vadd.f32 %v1206, %v1226
    %v1230 = vxor.u32 %v1229, 2147483648
    %v1231 = vmul.f32 %v1230, 1.442695
    %v1232 = vpow.pop %v1231
    %v1233 = vadd.f32 %v1232, 1.0
    %v1234 = vrcp.pop %v1233
    %v1235 = vmul.f32 %v1233, %v1234
    %v1236 = vsub.f32 1.0, %v1235
    %v1237 = vmul.f32 %v1234, %v1236
    %v1238 = vadd.f32 %v1234, %v1237
    %vm1239 = vweird.f32 %v1233
    %vm1240 = vweird.f32 %v1234
    %vm1241 = vmor %vm1239, %vm1240
    %v1242 = vsel %vm1241, %v1234, %v1238
    %v1243 = vand.u32 2147483647, %v1233
    %vm1244 = vcmp.eq.f32.partialorder %v1243, 8.507059e+37
    %v1245 = vand.u32 %v1233, 2147483648
    %v1246 = vor.u32 1.1754944e-38, %v1245
    %v1247 = vsel %vm1244, %v1246, %v1242
    %v1248 = vmul.f32 1.0, %v1247
    %v1249 = vtanh.pop %v1229
    %v1250 = vmul.f32 %v1248, %v1182
    %1252 = vrot.lane.b32.xlu0 %v1249, 64
    %v1253 = vpop.permute.xlu0 %1252
    %v1255 = vmul.f32 %v1248, %v1253
    %1257 = vrot.lane.b32.xlu0 %v1255, 32
    %v1258 = vpop.permute.xlu0 %1257
    %v1260 = vadd.f32 %v1250, %v1258
    %v1261 = vtanh.pop %v1260
    %1263 = vrot.lane.b32.xlu0 %v1261, 64
    %v1264 = vpop.permute.xlu0 %1263
    %v1266 = vmul.f32 %v1248, %v1264
    %v1267 = vld [vmem:[%s5] sm:$0x1]
    %v1269 = vperm.slane %v1267, 0
    %1270 = vrot.lane.b32.xlu0 %v1269, 96
    %v1271 = vpop.permute.xlu0 %1270
    %v1273 = vmul.f32 %v1266, %v1271
    %1275 = vrot.lane.b32.xlu0 %v1273, 32
    %v1276 = vpop.permute.xlu0 %1275
    %v1278 = vsel %vm211, %v1276, 0.0
    %1279 = vadd.xlane.f32.xlu0 %v1278
    %v1280 = vpop.xlane.xlu0 %1279
    %s1281 = sld [smem:[#allocation2]]
    %v1282 = vstv %s1281
    %v1283 = vadd.f32 %v1280, %v1282
    %vm1284 = vcmask 7168
    %1285 = vst.msk [vmem:[%s7] sm:$0xff] %vm1284, %v1283
    // Predicated region
    $region42: #{tpu_custom_call.1} parent=1 // pred_check
      _
    $region43: #{tpu_custom_call.1} parent=1 // pred_check_branch
      %1287 = sbr.rel (0) target = $region45
    $region44: #{tpu_custom_call.1} parent=1 // pred_region
      _
    $region45: #{tpu_custom_call.1} parent=1 // pred_fallthru
      _
    // Predicated region
    $region46: #{tpu_custom_call.1} parent=1 // pred_check
      _
    $region47: #{tpu_custom_call.1} parent=1 // pred_check_branch
      %1289 = sbr.rel (0) target = $region49
    $region48: #{tpu_custom_call.1} parent=1 // pred_region
      _
    $region49: #{tpu_custom_call.1} parent=1 // pred_fallthru
      _
    %1290 = vsyncpa [#allocation4], 1
    %1291 = vsyncpa [#allocation6], 1

</llo_original>
